<compile_context>
chip_gen: v7x
topology: tpu7x:2x2x1
jax: 0.10.0
libtpu: 0.0.40
codegen_flags: <defaults>
</compile_context>

<pallas_src>
import functools

import jax
import jax.numpy as jnp
from jax.experimental import pallas as pl
from jax.experimental.pallas import tpu as pltpu  # noqa: F401  (TPU backend)


# ---------------------------------------------------------------------------
# Kernel 1: hoisted input projection (both directions, all timesteps, one dot)
#   x_comb_flat : (T*B, 2E)  time-major rows, cols = [x_t | x_{T-1-t}]
#   wih_comb    : (2E, 4G)   per-gate 128-lane blocks: [fwd(H) | bwd(H) | pad]
#   bias_comb   : (1, 4G)
# ---------------------------------------------------------------------------
def _input_proj_kernel(x_ref, w_ref, b_ref, o_ref):
    o_ref[...] = (
        jnp.dot(x_ref[...], w_ref[...], preferred_element_type=jnp.float32)
        + b_ref[...]
    )


def input_projection(x_comb_flat, wih_comb, bias_comb):
    M = x_comb_flat.shape[0]
    G4 = wih_comb.shape[1]
    return pl.pallas_call(
        _input_proj_kernel,
        out_shape=jax.ShapeDtypeStruct((M, G4), jnp.float32),
    )(x_comb_flat, wih_comb, bias_comb)


# ---------------------------------------------------------------------------
# Kernel 2: fused bidirectional LSTM recurrence, single invocation.
#   gx_ref  : (T, B, 4G)  precomputed x-gates (fwd lanes 0:H, bwd lanes H:2H per gate)
#   whh_ref : (G, 4G)     block-diagonal recurrent weights (pad rows are zero)
#   hs_ref  : (T, B, G)   per-step combined hidden [h_f | h_b | 0-pad]
#   hfin/cfin : (B, G)    final states, written once after the loop
# PyTorch gate order [i, f, g, o]; each gate occupies a 128-lane-aligned block.
# ---------------------------------------------------------------------------
def _bilstm_kernel(gx_ref, whh_ref, hs_ref, hfin_ref, cfin_ref):
    T, B, G4 = gx_ref.shape
    G = G4 // 4
    whh = whh_ref[...]                                   # resident, loaded once

    def step(t, carry):
        h, c = carry
        gates = gx_ref[t] + jnp.dot(h, whh, preferred_element_type=jnp.float32)
        i_g = jax.nn.sigmoid(gates[:, 0 * G:1 * G])      # vreg-aligned slices
        f_g = jax.nn.sigmoid(gates[:, 1 * G:2 * G])
        g_g = jnp.tanh(gates[:, 2 * G:3 * G])
        o_g = jax.nn.sigmoid(gates[:, 3 * G:4 * G])
        c_new = f_g * c + i_g * g_g
        h_new = o_g * jnp.tanh(c_new)
        hs_ref[t] = h_new                                # lane-dense (B, 128) store
        return (h_new, c_new)

    init = (jnp.zeros((B, G), jnp.float32), jnp.zeros((B, G), jnp.float32))
    h_fin, c_fin = jax.lax.fori_loop(0, T, step, init, unroll=True)
    hfin_ref[...] = h_fin                                # written exactly once
    cfin_ref[...] = c_fin


def run_bilstm(gates_x, whh_comb):
    T, B, G4 = gates_x.shape
    G = G4 // 4
    return pl.pallas_call(
        _bilstm_kernel,
        out_shape=(
            jax.ShapeDtypeStruct((T, B, G), jnp.float32),
            jax.ShapeDtypeStruct((B, G), jnp.float32),
            jax.ShapeDtypeStruct((B, G), jnp.float32),
        ),
    )(gates_x, whh_comb)


# ---------------------------------------------------------------------------
# Kernel 3: fused epilogue — Wh projection (bias=False), reduce_h, reduce_c.
# ---------------------------------------------------------------------------
def _epilogue_kernel(enc_ref, whT_ref, h_ref, rhw_ref, rhb_ref,
                     c_ref, rcw_ref, rcb_ref,
                     feats_ref, hred_ref, cred_ref):
    feats_ref[...] = jnp.dot(enc_ref[...], whT_ref[...],
                             preferred_element_type=jnp.float32)
    hred_ref[...] = jnp.maximum(
        jnp.dot(h_ref[...], rhw_ref[...], preferred_element_type=jnp.float32)
        + rhb_ref[...], 0.0)
    cred_ref[...] = jnp.maximum(
        jnp.dot(c_ref[...], rcw_ref[...], preferred_element_type=jnp.float32)
        + rcb_ref[...], 0.0)


def epilogue(enc_flat, Wh_wT, h_comb, rh_wT, rh_b2, c_comb, rc_wT, rc_b2):
    M, H2 = enc_flat.shape
    B = h_comb.shape[0]
    H = rh_wT.shape[1]
    return pl.pallas_call(
        _epilogue_kernel,
        out_shape=(
            jax.ShapeDtypeStruct((M, H2), jnp.float32),
            jax.ShapeDtypeStruct((B, H), jnp.float32),
            jax.ShapeDtypeStruct((B, H), jnp.float32),
        ),
    )(enc_flat, Wh_wT, h_comb, rh_wT, rh_b2, c_comb, rc_wT, rc_b2)


# ---------------------------------------------------------------------------
# Parameter prep: pack PyTorch-layout weights into the fused, lane-aligned,
# pre-transposed layouts ONCE (no .T inside the forward pass).
# ---------------------------------------------------------------------------
def prepare_params(params):
    H = params["whh_f"].shape[1]
    E = params["wih_f"].shape[1]
    G = max(128, ((2 * H + 127) // 128) * 128)          # padded per-gate lane width

    wih_comb = jnp.zeros((2 * E, 4 * G), jnp.float32)
    whh_comb = jnp.zeros((G, 4 * G), jnp.float32)
    bias_comb = jnp.zeros((1, 4 * G), jnp.float32)
    for k in range(4):                                   # PyTorch gate order [i,f,g,o]
        wf = params["wih_f"][k * H:(k + 1) * H, :].T     # (E, H)
        wb = params["wih_b"][k * H:(k + 1) * H, :].T
        uf = params["whh_f"][k * H:(k + 1) * H, :].T     # (H, H)
        ub = params["whh_b"][k * H:(k + 1) * H, :].T
        bf = params["bih_f"][k * H:(k + 1) * H] + params["bhh_f"][k * H:(k + 1) * H]
        bb = params["bih_b"][k * H:(k + 1) * H] + params["bhh_b"][k * H:(k + 1) * H]
        wih_comb = wih_comb.at[0:E, k * G:k * G + H].set(wf)
        wih_comb = wih_comb.at[E:2 * E, k * G + H:k * G + 2 * H].set(wb)
        whh_comb = whh_comb.at[0:H, k * G:k * G + H].set(uf)
        whh_comb = whh_comb.at[H:2 * H, k * G + H:k * G + 2 * H].set(ub)
        bias_comb = bias_comb.at[0, k * G:k * G + H].set(bf)
        bias_comb = bias_comb.at[0, k * G + H:k * G + 2 * H].set(bb)

    return {
        "embed": params["embed"],
        "wih_comb": wih_comb,
        "whh_comb": whh_comb,
        "bias_comb": bias_comb,
        "Wh_wT": params["Wh_w"].T,                       # (2H, 2H)
        "reduce_h_wT": params["reduce_h_w"].T,           # (2H, H)
        "reduce_h_b2": params["reduce_h_b"].reshape(1, -1),
        "reduce_c_wT": params["reduce_c_w"].T,
        "reduce_c_b2": params["reduce_c_b"].reshape(1, -1),
        "hid_dim": H,
    }


# ---------------------------------------------------------------------------
# Encoder forward (matches PyTorch module semantics; no pack_padded_sequence).
# ---------------------------------------------------------------------------
def encoder_forward(prepared, inp):
    H = prepared["hid_dim"]
    embedded = jnp.take(prepared["embed"], inp, axis=0)   # (B, T, E)   glue gather
    B, T, E = embedded.shape
    x_tbe = jnp.transpose(embedded, (1, 0, 2))            # (T, B, E)   time-major
    x_comb = jnp.concatenate([x_tbe, x_tbe[::-1]], -1)    # (T, B, 2E)  [x_t | x_rev_t]
    x_comb_flat = x_comb.reshape(T * B, 2 * E)

    # 1) hoisted input projection for all T and both directions in one matmul
    gates_x = input_projection(x_comb_flat, prepared["wih_comb"],
                               prepared["bias_comb"]).reshape(T, B, -1)

    # 2) fused bidirectional recurrence, single invocation
    hs_pad, h_fin, c_fin = run_bilstm(gates_x, prepared["whh_comb"])

    # reassemble PyTorch-ordered enc_out (glue: flip backward half, transpose)
    hs_f = hs_pad[:, :, 0:H]                              # (T, B, H) fwd, time order
    hs_b = hs_pad[::-1, :, H:2 * H]                       # (T, B, H) bwd, time order
    enc_out = jnp.transpose(jnp.concatenate([hs_f, hs_b], -1), (1, 0, 2))  # (B,T,2H)

    enc_flat = enc_out.reshape(B * T, 2 * H)              # == enc_out.view(-1, 2H)
    h_comb = h_fin[:, 0:2 * H]                            # [h_fwd | h_bwd]
    c_comb = c_fin[:, 0:2 * H]

    # 3) fused epilogue: Wh, reduce_h + ReLU, reduce_c + ReLU
    enc_feats, h_red, c_red = epilogue(
        enc_flat, prepared["Wh_wT"], h_comb,
        prepared["reduce_h_wT"], prepared["reduce_h_b2"],
        c_comb, prepared["reduce_c_wT"], prepared["reduce_c_b2"])

    return enc_out, enc_feats, (h_red[None, :, :], c_red[None, :, :])


# ---------------------------------------------------------------------------
# Pure-JAX reference of the PyTorch module (correctness check only)
# ---------------------------------------------------------------------------
def _reference_forward(params, inp):
    emb = jnp.take(params["embed"], inp, axis=0)           # (B, T, E)
    B, T, _ = emb.shape
    H = params["whh_f"].shape[1]

    def lstm(x_tbe, wih, whh, bih, bhh):
        def step(carry, x_t):
            h, c = carry
            gates = x_t @ wih.T + h @ whh.T + bih + bhh
            i = jax.nn.sigmoid(gates[:, 0:H])
            f = jax.nn.sigmoid(gates[:, H:2 * H])
            g = jnp.tanh(gates[:, 2 * H:3 * H])
            o = jax.nn.sigmoid(gates[:, 3 * H:4 * H])
            c = f * c + i * g
            h = o * jnp.tanh(c)
            return (h, c), h
        init = (jnp.zeros((B, H), jnp.float32), jnp.zeros((B, H), jnp.float32))
        (h, c), hs = jax.lax.scan(step, init, x_tbe)
        return hs, h, c

    x_tbe = jnp.transpose(emb, (1, 0, 2))
    hs_f, h_f, c_f = lstm(x_tbe, params["wih_f"], params["whh_f"],
                          params["bih_f"], params["bhh_f"])
    hs_b, h_b, c_b = lstm(x_tbe[::-1], params["wih_b"], params["whh_b"],
                          params["bih_b"], params["bhh_b"])
    hs_b = hs_b[::-1]
    enc_out = jnp.transpose(jnp.concatenate([hs_f, hs_b], -1), (1, 0, 2))
    enc_feats = enc_out.reshape(-1, 2 * H) @ params["Wh_w"].T
    h_in = jnp.concatenate([h_f, h_b], -1)
    c_in = jnp.concatenate([c_f, c_b], -1)
    h_red = jax.nn.relu(h_in @ params["reduce_h_w"].T + params["reduce_h_b"])
    c_red = jax.nn.relu(c_in @ params["reduce_c_w"].T + params["reduce_c_b"])
    return enc_out, enc_feats, (h_red[None], c_red[None])


# ---------------------------------------------------------------------------
# Deterministic parameter construction (PyTorch module shapes)
# ---------------------------------------------------------------------------
def init_params(key, vocab_size, emb_dim, hid_dim):
    ks = jax.random.split(key, 12)
    H, E = hid_dim, emb_dim
    s = 0.1
    return {
        "embed": jax.random.normal(ks[0], (vocab_size, E), jnp.float32) * s,
        "wih_f": jax.random.normal(ks[1], (4 * H, E), jnp.float32) * s,
        "whh_f": jax.random.normal(ks[2], (4 * H, H), jnp.float32) * s,
        "bih_f": jax.random.normal(ks[3], (4 * H,), jnp.float32) * s,
        "bhh_f": jax.random.normal(ks[4], (4 * H,), jnp.float32) * s,
        "wih_b": jax.random.normal(ks[5], (4 * H, E), jnp.float32) * s,
        "whh_b": jax.random.normal(ks[6], (4 * H, H), jnp.float32) * s,
        "bih_b": jax.random.normal(ks[7], (4 * H,), jnp.float32) * s,
        "bhh_b": jax.random.normal(ks[8], (4 * H,), jnp.float32) * s,
        "Wh_w": jax.random.normal(ks[9], (2 * H, 2 * H), jnp.float32) * s,
        "reduce_h_w": jax.random.normal(ks[10], (H, 2 * H), jnp.float32) * s,
        "reduce_h_b": jnp.zeros((H,), jnp.float32),
        "reduce_c_w": jax.random.normal(ks[11], (H, 2 * H), jnp.float32) * s,
        "reduce_c_b": jnp.zeros((H,), jnp.float32),
    }


if __name__ == "__main__":
    VOCAB, EMB, HID = 50, 32, 32
    B, T = 2, 8

    key = jax.random.PRNGKey(0)
    k_params, k_inp = jax.random.split(key)
    params = init_params(k_params, VOCAB, EMB, HID)
    prepared = prepare_params(params)
    inp = jax.random.randint(k_inp, (B, T), 0, VOCAB, dtype=jnp.int32)

    fwd = jax.jit(functools.partial(encoder_forward, prepared))
    enc_out, enc_feats, (h_red, c_red) = fwd(inp)
    jax.block_until_ready((enc_out, enc_feats, h_red, c_red))

    assert enc_out.shape == (B, T, 2 * HID)
    assert enc_feats.shape == (B * T, 2 * HID)
    assert h_red.shape == (1, B, HID)
    assert c_red.shape == (1, B, HID)

    # sanity check against a pure-JAX reference of the PyTorch module
    ref_out, ref_feats, (ref_h, ref_c) = jax.jit(
        functools.partial(_reference_forward, params))(inp)
    for got, want in ((enc_out, ref_out), (enc_feats, ref_feats),
                      (h_red, ref_h), (c_red, ref_c)):
        err = float(jnp.max(jnp.abs(got - want)))
        assert jnp.allclose(got, want, atol=5e-3, rtol=5e-3), err

    print("KERNEL_OK")
</pallas_src>

<mosaic_0001>
module attributes {stable_mosaic.version = 11 : i64} {
  func.func @_input_proj_kernel(%arg0: memref<16x64xf32, #tpu.memory_space<vmem>>, %arg1: memref<64x512xf32, #tpu.memory_space<vmem>>, %arg2: memref<1x512xf32, #tpu.memory_space<vmem>>, %arg3: memref<16x512xf32, #tpu.memory_space<vmem>>) attributes {dimension_semantics = [], scalar_prefetch = 0 : i64, scratch_operands = 0 : i64, tpu.core_type = #tpu.core_type<tc>} {
    %c0 = arith.constant 0 : index
    %c0_0 = arith.constant 0 : index
    %0 = vector.load %arg0[%c0, %c0_0] : memref<16x64xf32, #tpu.memory_space<vmem>>, vector<16x64xf32>
    %c0_1 = arith.constant 0 : index
    %c0_2 = arith.constant 0 : index
    %1 = vector.load %arg1[%c0_1, %c0_2] : memref<64x512xf32, #tpu.memory_space<vmem>>, vector<64x512xf32>
    %cst = arith.constant dense<0.000000e+00> : vector<16x512xf32>
    %2 = tpu.matmul %0, %1, %cst {dimension_numbers = #tpu.dot_dimension_numbers<[1], [0], [0], [1], [0, 0, 1, 1], [], []>} : vector<16x64xf32>, vector<64x512xf32>, vector<16x512xf32> -> vector<16x512xf32>
    %c0_3 = arith.constant 0 : index
    %c0_4 = arith.constant 0 : index
    %3 = vector.load %arg2[%c0_3, %c0_4] : memref<1x512xf32, #tpu.memory_space<vmem>>, vector<1x512xf32>
    %4 = vector.broadcast %3 : vector<1x512xf32> to vector<16x512xf32>
    %5 = arith.addf %2, %4 : vector<16x512xf32>
    %c0_5 = arith.constant 0 : index
    %c0_6 = arith.constant 0 : index
    %6 = vector.load %arg3[%c0_5, %c0_6] : memref<16x512xf32, #tpu.memory_space<vmem>>, vector<16x512xf32>
    tpu.vector_store %arg3[%c0_5, %c0_6], %5 {strides = array<i32>} : memref<16x512xf32, #tpu.memory_space<vmem>>, vector<16x512xf32>,
    return
  }
}

module attributes {stable_mosaic.version = 11 : i64} {
  func.func @_bilstm_kernel(%arg0: memref<8x2x512xf32, #tpu.memory_space<vmem>>, %arg1: memref<128x512xf32, #tpu.memory_space<vmem>>, %arg2: memref<8x2x128xf32, #tpu.memory_space<vmem>>, %arg3: memref<2x128xf32, #tpu.memory_space<vmem>>, %arg4: memref<2x128xf32, #tpu.memory_space<vmem>>) attributes {dimension_semantics = [], scalar_prefetch = 0 : i64, scratch_operands = 0 : i64, tpu.core_type = #tpu.core_type<tc>} {
    %c0 = arith.constant 0 : index
    %c0_0 = arith.constant 0 : index
    %0 = vector.load %arg1[%c0, %c0_0] : memref<128x512xf32, #tpu.memory_space<vmem>>, vector<128x512xf32>
    %cst = arith.constant 0.000000e+00 : f32
    %1 = vector.broadcast %cst : f32 to vector<2x128xf32>
    %cst_1 = arith.constant 0.000000e+00 : f32
    %2 = vector.broadcast %cst_1 : f32 to vector<2x128xf32>
    %c0_i32 = arith.constant 0 : i32
    %3 = arith.index_cast %c0_i32 : i32 to index
    %c0_2 = arith.constant 0 : index
    %c0_3 = arith.constant 0 : index
    %4 = vector.load %arg0[%3, %c0_2, %c0_3] : memref<8x2x512xf32, #tpu.memory_space<vmem>>, vector<1x2x512xf32>
    %5 = vector.shape_cast %4 : vector<1x2x512xf32> to vector<2x512xf32>
    %cst_4 = arith.constant dense<0.000000e+00> : vector<2x512xf32>
    %6 = tpu.matmul %1, %0, %cst_4 {dimension_numbers = #tpu.dot_dimension_numbers<[1], [0], [0], [1], [0, 0, 1, 1], [], []>} : vector<2x128xf32>, vector<128x512xf32>, vector<2x512xf32> -> vector<2x512xf32>
    %7 = arith.addf %5, %6 : vector<2x512xf32>
    %8 = vector.extract_strided_slice %7 {offsets = [0, 0], sizes = [2, 128], strides = [1, 1]} : vector<2x512xf32> to vector<2x128xf32>
    %9 = arith.negf %8 : vector<2x128xf32>
    %10 = math.exp %9 : vector<2x128xf32>
    %cst_5 = arith.constant 1.000000e+00 : f32
    %11 = vector.broadcast %cst_5 : f32 to vector<2x128xf32>
    %12 = arith.addf %11, %10 : vector<2x128xf32>
    %13 = arith.divf %11, %12 : vector<2x128xf32>
    %14 = vector.extract_strided_slice %7 {offsets = [0, 128], sizes = [2, 128], strides = [1, 1]} : vector<2x512xf32> to vector<2x128xf32>
    %15 = arith.negf %14 : vector<2x128xf32>
    %16 = math.exp %15 : vector<2x128xf32>
    %cst_6 = arith.constant 1.000000e+00 : f32
    %17 = vector.broadcast %cst_6 : f32 to vector<2x128xf32>
    %18 = arith.addf %17, %16 : vector<2x128xf32>
    %19 = arith.divf %17, %18 : vector<2x128xf32>
    %20 = vector.extract_strided_slice %7 {offsets = [0, 256], sizes = [2, 128], strides = [1, 1]} : vector<2x512xf32> to vector<2x128xf32>
    %21 = math.tanh %20 : vector<2x128xf32>
    %22 = vector.extract_strided_slice %7 {offsets = [0, 384], sizes = [2, 128], strides = [1, 1]} : vector<2x512xf32> to vector<2x128xf32>
    %23 = arith.negf %22 : vector<2x128xf32>
    %24 = math.exp %23 : vector<2x128xf32>
    %cst_7 = arith.constant 1.000000e+00 : f32
    %25 = vector.broadcast %cst_7 : f32 to vector<2x128xf32>
    %26 = arith.addf %25, %24 : vector<2x128xf32>
    %27 = arith.divf %25, %26 : vector<2x128xf32>
    %28 = arith.mulf %19, %2 : vector<2x128xf32>
    %29 = arith.mulf %13, %21 : vector<2x128xf32>
    %30 = arith.addf %28, %29 : vector<2x128xf32>
    %31 = math.tanh %30 : vector<2x128xf32>
    %32 = arith.mulf %27, %31 : vector<2x128xf32>
    %33 = arith.index_cast %c0_i32 : i32 to index
    %c0_8 = arith.constant 0 : index
    %c0_9 = arith.constant 0 : index
    %34 = vector.load %arg2[%33, %c0_8, %c0_9] : memref<8x2x128xf32, #tpu.memory_space<vmem>>, vector<1x2x128xf32>
    %35 = vector.shape_cast %34 : vector<1x2x128xf32> to vector<2x128xf32>
    %36 = vector.shape_cast %32 : vector<2x128xf32> to vector<1x2x128xf32>
    tpu.vector_store %arg2[%33, %c0_8, %c0_9], %36 {strides = array<i32>} : memref<8x2x128xf32, #tpu.memory_space<vmem>>, vector<1x2x128xf32>,
    %c1_i32 = arith.constant 1 : i32
    %37 = arith.index_cast %c1_i32 : i32 to index
    %c0_10 = arith.constant 0 : index
    %c0_11 = arith.constant 0 : index
    %38 = vector.load %arg0[%37, %c0_10, %c0_11] : memref<8x2x512xf32, #tpu.memory_space<vmem>>, vector<1x2x512xf32>
    %39 = vector.shape_cast %38 : vector<1x2x512xf32> to vector<2x512xf32>
    %cst_12 = arith.constant dense<0.000000e+00> : vector<2x512xf32>
    %40 = tpu.matmul %32, %0, %cst_12 {dimension_numbers = #tpu.dot_dimension_numbers<[1], [0], [0], [1], [0, 0, 1, 1], [], []>} : vector<2x128xf32>, vector<128x512xf32>, vector<2x512xf32> -> vector<2x512xf32>
    %41 = arith.addf %39, %40 : vector<2x512xf32>
    %42 = vector.extract_strided_slice %41 {offsets = [0, 0], sizes = [2, 128], strides = [1, 1]} : vector<2x512xf32> to vector<2x128xf32>
    %43 = arith.negf %42 : vector<2x128xf32>
    %44 = math.exp %43 : vector<2x128xf32>
    %cst_13 = arith.constant 1.000000e+00 : f32
    %45 = vector.broadcast %cst_13 : f32 to vector<2x128xf32>
    %46 = arith.addf %45, %44 : vector<2x128xf32>
    %47 = arith.divf %45, %46 : vector<2x128xf32>
    %48 = vector.extract_strided_slice %41 {offsets = [0, 128], sizes = [2, 128], strides = [1, 1]} : vector<2x512xf32> to vector<2x128xf32>
    %49 = arith.negf %48 : vector<2x128xf32>
    %50 = math.exp %49 : vector<2x128xf32>
    %cst_14 = arith.constant 1.000000e+00 : f32
    %51 = vector.broadcast %cst_14 : f32 to vector<2x128xf32>
    %52 = arith.addf %51, %50 : vector<2x128xf32>
    %53 = arith.divf %51, %52 : vector<2x128xf32>
    %54 = vector.extract_strided_slice %41 {offsets = [0, 256], sizes = [2, 128], strides = [1, 1]} : vector<2x512xf32> to vector<2x128xf32>
    %55 = math.tanh %54 : vector<2x128xf32>
    %56 = vector.extract_strided_slice %41 {offsets = [0, 384], sizes = [2, 128], strides = [1, 1]} : vector<2x512xf32> to vector<2x128xf32>
    %57 = arith.negf %56 : vector<2x128xf32>
    %58 = math.exp %57 : vector<2x128xf32>
    %cst_15 = arith.constant 1.000000e+00 : f32
    %59 = vector.broadcast %cst_15 : f32 to vector<2x128xf32>
    %60 = arith.addf %59, %58 : vector<2x128xf32>
    %61 = arith.divf %59, %60 : vector<2x128xf32>
    %62 = arith.mulf %53, %30 : vector<2x128xf32>
    %63 = arith.mulf %47, %55 : vector<2x128xf32>
    %64 = arith.addf %62, %63 : vector<2x128xf32>
    %65 = math.tanh %64 : vector<2x128xf32>
    %66 = arith.mulf %61, %65 : vector<2x128xf32>
    %67 = arith.index_cast %c1_i32 : i32 to index
    %c0_16 = arith.constant 0 : index
    %c0_17 = arith.constant 0 : index
    %68 = vector.load %arg2[%67, %c0_16, %c0_17] : memref<8x2x128xf32, #tpu.memory_space<vmem>>, vector<1x2x128xf32>
    %69 = vector.shape_cast %68 : vector<1x2x128xf32> to vector<2x128xf32>
    %70 = vector.shape_cast %66 : vector<2x128xf32> to vector<1x2x128xf32>
    tpu.vector_store %arg2[%67, %c0_16, %c0_17], %70 {strides = array<i32>} : memref<8x2x128xf32, #tpu.memory_space<vmem>>, vector<1x2x128xf32>,
    %c2_i32 = arith.constant 2 : i32
    %71 = arith.index_cast %c2_i32 : i32 to index
    %c0_18 = arith.constant 0 : index
    %c0_19 = arith.constant 0 : index
    %72 = vector.load %arg0[%71, %c0_18, %c0_19] : memref<8x2x512xf32, #tpu.memory_space<vmem>>, vector<1x2x512xf32>
    %73 = vector.shape_cast %72 : vector<1x2x512xf32> to vector<2x512xf32>
    %cst_20 = arith.constant dense<0.000000e+00> : vector<2x512xf32>
    %74 = tpu.matmul %66, %0, %cst_20 {dimension_numbers = #tpu.dot_dimension_numbers<[1], [0], [0], [1], [0, 0, 1, 1], [], []>} : vector<2x128xf32>, vector<128x512xf32>, vector<2x512xf32> -> vector<2x512xf32>
    %75 = arith.addf %73, %74 : vector<2x512xf32>
    %76 = vector.extract_strided_slice %75 {offsets = [0, 0], sizes = [2, 128], strides = [1, 1]} : vector<2x512xf32> to vector<2x128xf32>
    %77 = arith.negf %76 : vector<2x128xf32>
    %78 = math.exp %77 : vector<2x128xf32>
    %cst_21 = arith.constant 1.000000e+00 : f32
    %79 = vector.broadcast %cst_21 : f32 to vector<2x128xf32>
    %80 = arith.addf %79, %78 : vector<2x128xf32>
    %81 = arith.divf %79, %80 : vector<2x128xf32>
    %82 = vector.extract_strided_slice %75 {offsets = [0, 128], sizes = [2, 128], strides = [1, 1]} : vector<2x512xf32> to vector<2x128xf32>
    %83 = arith.negf %82 : vector<2x128xf32>
    %84 = math.exp %83 : vector<2x128xf32>
    %cst_22 = arith.constant 1.000000e+00 : f32
    %85 = vector.broadcast %cst_22 : f32 to vector<2x128xf32>
    %86 = arith.addf %85, %84 : vector<2x128xf32>
    %87 = arith.divf %85, %86 : vector<2x128xf32>
    %88 = vector.extract_strided_slice %75 {offsets = [0, 256], sizes = [2, 128], strides = [1, 1]} : vector<2x512xf32> to vector<2x128xf32>
    %89 = math.tanh %88 : vector<2x128xf32>
    %90 = vector.extract_strided_slice %75 {offsets = [0, 384], sizes = [2, 128], strides = [1, 1]} : vector<2x512xf32> to vector<2x128xf32>
    %91 = arith.negf %90 : vector<2x128xf32>
    %92 = math.exp %91 : vector<2x128xf32>
    %cst_23 = arith.constant 1.000000e+00 : f32
    %93 = vector.broadcast %cst_23 : f32 to vector<2x128xf32>
    %94 = arith.addf %93, %92 : vector<2x128xf32>
    %95 = arith.divf %93, %94 : vector<2x128xf32>
    %96 = arith.mulf %87, %64 : vector<2x128xf32>
    %97 = arith.mulf %81, %89 : vector<2x128xf32>
    %98 = arith.addf %96, %97 : vector<2x128xf32>
    %99 = math.tanh %98 : vector<2x128xf32>
    %100 = arith.mulf %95, %99 : vector<2x128xf32>
    %101 = arith.index_cast %c2_i32 : i32 to index
    %c0_24 = arith.constant 0 : index
    %c0_25 = arith.constant 0 : index
    %102 = vector.load %arg2[%101, %c0_24, %c0_25] : memref<8x2x128xf32, #tpu.memory_space<vmem>>, vector<1x2x128xf32>
    %103 = vector.shape_cast %102 : vector<1x2x128xf32> to vector<2x128xf32>
    %104 = vector.shape_cast %100 : vector<2x128xf32> to vector<1x2x128xf32>
    tpu.vector_store %arg2[%101, %c0_24, %c0_25], %104 {strides = array<i32>} : memref<8x2x128xf32, #tpu.memory_space<vmem>>, vector<1x2x128xf32>,
    %c3_i32 = arith.constant 3 : i32
    %105 = arith.index_cast %c3_i32 : i32 to index
    %c0_26 = arith.constant 0 : index
    %c0_27 = arith.constant 0 : index
    %106 = vector.load %arg0[%105, %c0_26, %c0_27] : memref<8x2x512xf32, #tpu.memory_space<vmem>>, vector<1x2x512xf32>
    %107 = vector.shape_cast %106 : vector<1x2x512xf32> to vector<2x512xf32>
    %cst_28 = arith.constant dense<0.000000e+00> : vector<2x512xf32>
    %108 = tpu.matmul %100, %0, %cst_28 {dimension_numbers = #tpu.dot_dimension_numbers<[1], [0], [0], [1], [0, 0, 1, 1], [], []>} : vector<2x128xf32>, vector<128x512xf32>, vector<2x512xf32> -> vector<2x512xf32>
    %109 = arith.addf %107, %108 : vector<2x512xf32>
    %110 = vector.extract_strided_slice %109 {offsets = [0, 0], sizes = [2, 128], strides = [1, 1]} : vector<2x512xf32> to vector<2x128xf32>
    %111 = arith.negf %110 : vector<2x128xf32>
    %112 = math.exp %111 : vector<2x128xf32>
    %cst_29 = arith.constant 1.000000e+00 : f32
    %113 = vector.broadcast %cst_29 : f32 to vector<2x128xf32>
    %114 = arith.addf %113, %112 : vector<2x128xf32>
    %115 = arith.divf %113, %114 : vector<2x128xf32>
    %116 = vector.extract_strided_slice %109 {offsets = [0, 128], sizes = [2, 128], strides = [1, 1]} : vector<2x512xf32> to vector<2x128xf32>
    %117 = arith.negf %116 : vector<2x128xf32>
    %118 = math.exp %117 : vector<2x128xf32>
    %cst_30 = arith.constant 1.000000e+00 : f32
    %119 = vector.broadcast %cst_30 : f32 to vector<2x128xf32>
    %120 = arith.addf %119, %118 : vector<2x128xf32>
    %121 = arith.divf %119, %120 : vector<2x128xf32>
    %122 = vector.extract_strided_slice %109 {offsets = [0, 256], sizes = [2, 128], strides = [1, 1]} : vector<2x512xf32> to vector<2x128xf32>
    %123 = math.tanh %122 : vector<2x128xf32>
    %124 = vector.extract_strided_slice %109 {offsets = [0, 384], sizes = [2, 128], strides = [1, 1]} : vector<2x512xf32> to vector<2x128xf32>
    %125 = arith.negf %124 : vector<2x128xf32>
    %126 = math.exp %125 : vector<2x128xf32>
    %cst_31 = arith.constant 1.000000e+00 : f32
    %127 = vector.broadcast %cst_31 : f32 to vector<2x128xf32>
    %128 = arith.addf %127, %126 : vector<2x128xf32>
    %129 = arith.divf %127, %128 : vector<2x128xf32>
    %130 = arith.mulf %121, %98 : vector<2x128xf32>
    %131 = arith.mulf %115, %123 : vector<2x128xf32>
    %132 = arith.addf %130, %131 : vector<2x128xf32>
    %133 = math.tanh %132 : vector<2x128xf32>
    %134 = arith.mulf %129, %133 : vector<2x128xf32>
    %135 = arith.index_cast %c3_i32 : i32 to index
    %c0_32 = arith.constant 0 : index
    %c0_33 = arith.constant 0 : index
    %136 = vector.load %arg2[%135, %c0_32, %c0_33] : memref<8x2x128xf32, #tpu.memory_space<vmem>>, vector<1x2x128xf32>
    %137 = vector.shape_cast %136 : vector<1x2x128xf32> to vector<2x128xf32>
    %138 = vector.shape_cast %134 : vector<2x128xf32> to vector<1x2x128xf32>
    tpu.vector_store %arg2[%135, %c0_32, %c0_33], %138 {strides = array<i32>} : memref<8x2x128xf32, #tpu.memory_space<vmem>>, vector<1x2x128xf32>,
    %c4_i32 = arith.constant 4 : i32
    %139 = arith.index_cast %c4_i32 : i32 to index
    %c0_34 = arith.constant 0 : index
    %c0_35 = arith.constant 0 : index
    %140 = vector.load %arg0[%139, %c0_34, %c0_35] : memref<8x2x512xf32, #tpu.memory_space<vmem>>, vector<1x2x512xf32>
    %141 = vector.shape_cast %140 : vector<1x2x512xf32> to vector<2x512xf32>
    %cst_36 = arith.constant dense<0.000000e+00> : vector<2x512xf32>
    %142 = tpu.matmul %134, %0, %cst_36 {dimension_numbers = #tpu.dot_dimension_numbers<[1], [0], [0], [1], [0, 0, 1, 1], [], []>} : vector<2x128xf32>, vector<128x512xf32>, vector<2x512xf32> -> vector<2x512xf32>
    %143 = arith.addf %141, %142 : vector<2x512xf32>
    %144 = vector.extract_strided_slice %143 {offsets = [0, 0], sizes = [2, 128], strides = [1, 1]} : vector<2x512xf32> to vector<2x128xf32>
    %145 = arith.negf %144 : vector<2x128xf32>
    %146 = math.exp %145 : vector<2x128xf32>
    %cst_37 = arith.constant 1.000000e+00 : f32
    %147 = vector.broadcast %cst_37 : f32 to vector<2x128xf32>
    %148 = arith.addf %147, %146 : vector<2x128xf32>
    %149 = arith.divf %147, %148 : vector<2x128xf32>
    %150 = vector.extract_strided_slice %143 {offsets = [0, 128], sizes = [2, 128], strides = [1, 1]} : vector<2x512xf32> to vector<2x128xf32>
    %151 = arith.negf %150 : vector<2x128xf32>
    %152 = math.exp %151 : vector<2x128xf32>
    %cst_38 = arith.constant 1.000000e+00 : f32
    %153 = vector.broadcast %cst_38 : f32 to vector<2x128xf32>
    %154 = arith.addf %153, %152 : vector<2x128xf32>
    %155 = arith.divf %153, %154 : vector<2x128xf32>
    %156 = vector.extract_strided_slice %143 {offsets = [0, 256], sizes = [2, 128], strides = [1, 1]} : vector<2x512xf32> to vector<2x128xf32>
    %157 = math.tanh %156 : vector<2x128xf32>
    %158 = vector.extract_strided_slice %143 {offsets = [0, 384], sizes = [2, 128], strides = [1, 1]} : vector<2x512xf32> to vector<2x128xf32>
    %159 = arith.negf %158 : vector<2x128xf32>
    %160 = math.exp %159 : vector<2x128xf32>
    %cst_39 = arith.constant 1.000000e+00 : f32
    %161 = vector.broadcast %cst_39 : f32 to vector<2x128xf32>
    %162 = arith.addf %161, %160 : vector<2x128xf32>
    %163 = arith.divf %161, %162 : vector<2x128xf32>
    %164 = arith.mulf %155, %132 : vector<2x128xf32>
    %165 = arith.mulf %149, %157 : vector<2x128xf32>
    %166 = arith.addf %164, %165 : vector<2x128xf32>
    %167 = math.tanh %166 : vector<2x128xf32>
    %168 = arith.mulf %163, %167 : vector<2x128xf32>
    %169 = arith.index_cast %c4_i32 : i32 to index
    %c0_40 = arith.constant 0 : index
    %c0_41 = arith.constant 0 : index
    %170 = vector.load %arg2[%169, %c0_40, %c0_41] : memref<8x2x128xf32, #tpu.memory_space<vmem>>, vector<1x2x128xf32>
    %171 = vector.shape_cast %170 : vector<1x2x128xf32> to vector<2x128xf32>
    %172 = vector.shape_cast %168 : vector<2x128xf32> to vector<1x2x128xf32>
    tpu.vector_store %arg2[%169, %c0_40, %c0_41], %172 {strides = array<i32>} : memref<8x2x128xf32, #tpu.memory_space<vmem>>, vector<1x2x128xf32>,
    %c5_i32 = arith.constant 5 : i32
    %173 = arith.index_cast %c5_i32 : i32 to index
    %c0_42 = arith.constant 0 : index
    %c0_43 = arith.constant 0 : index
    %174 = vector.load %arg0[%173, %c0_42, %c0_43] : memref<8x2x512xf32, #tpu.memory_space<vmem>>, vector<1x2x512xf32>
    %175 = vector.shape_cast %174 : vector<1x2x512xf32> to vector<2x512xf32>
    %cst_44 = arith.constant dense<0.000000e+00> : vector<2x512xf32>
    %176 = tpu.matmul %168, %0, %cst_44 {dimension_numbers = #tpu.dot_dimension_numbers<[1], [0], [0], [1], [0, 0, 1, 1], [], []>} : vector<2x128xf32>, vector<128x512xf32>, vector<2x512xf32> -> vector<2x512xf32>
    %177 = arith.addf %175, %176 : vector<2x512xf32>
    %178 = vector.extract_strided_slice %177 {offsets = [0, 0], sizes = [2, 128], strides = [1, 1]} : vector<2x512xf32> to vector<2x128xf32>
    %179 = arith.negf %178 : vector<2x128xf32>
    %180 = math.exp %179 : vector<2x128xf32>
    %cst_45 = arith.constant 1.000000e+00 : f32
    %181 = vector.broadcast %cst_45 : f32 to vector<2x128xf32>
    %182 = arith.addf %181, %180 : vector<2x128xf32>
    %183 = arith.divf %181, %182 : vector<2x128xf32>
    %184 = vector.extract_strided_slice %177 {offsets = [0, 128], sizes = [2, 128], strides = [1, 1]} : vector<2x512xf32> to vector<2x128xf32>
    %185 = arith.negf %184 : vector<2x128xf32>
    %186 = math.exp %185 : vector<2x128xf32>
    %cst_46 = arith.constant 1.000000e+00 : f32
    %187 = vector.broadcast %cst_46 : f32 to vector<2x128xf32>
    %188 = arith.addf %187, %186 : vector<2x128xf32>
    %189 = arith.divf %187, %188 : vector<2x128xf32>
    %190 = vector.extract_strided_slice %177 {offsets = [0, 256], sizes = [2, 128], strides = [1, 1]} : vector<2x512xf32> to vector<2x128xf32>
    %191 = math.tanh %190 : vector<2x128xf32>
    %192 = vector.extract_strided_slice %177 {offsets = [0, 384], sizes = [2, 128], strides = [1, 1]} : vector<2x512xf32> to vector<2x128xf32>
    %193 = arith.negf %192 : vector<2x128xf32>
    %194 = math.exp %193 : vector<2x128xf32>
    %cst_47 = arith.constant 1.000000e+00 : f32
    %195 = vector.broadcast %cst_47 : f32 to vector<2x128xf32>
    %196 = arith.addf %195, %194 : vector<2x128xf32>
    %197 = arith.divf %195, %196 : vector<2x128xf32>
    %198 = arith.mulf %189, %166 : vector<2x128xf32>
    %199 = arith.mulf %183, %191 : vector<2x128xf32>
    %200 = arith.addf %198, %199 : vector<2x128xf32>
    %201 = math.tanh %200 : vector<2x128xf32>
    %202 = arith.mulf %197, %201 : vector<2x128xf32>
    %203 = arith.index_cast %c5_i32 : i32 to index
    %c0_48 = arith.constant 0 : index
    %c0_49 = arith.constant 0 : index
    %204 = vector.load %arg2[%203, %c0_48, %c0_49] : memref<8x2x128xf32, #tpu.memory_space<vmem>>, vector<1x2x128xf32>
    %205 = vector.shape_cast %204 : vector<1x2x128xf32> to vector<2x128xf32>
    %206 = vector.shape_cast %202 : vector<2x128xf32> to vector<1x2x128xf32>
    tpu.vector_store %arg2[%203, %c0_48, %c0_49], %206 {strides = array<i32>} : memref<8x2x128xf32, #tpu.memory_space<vmem>>, vector<1x2x128xf32>,
    %c6_i32 = arith.constant 6 : i32
    %207 = arith.index_cast %c6_i32 : i32 to index
    %c0_50 = arith.constant 0 : index
    %c0_51 = arith.constant 0 : index
    %208 = vector.load %arg0[%207, %c0_50, %c0_51] : memref<8x2x512xf32, #tpu.memory_space<vmem>>, vector<1x2x512xf32>
    %209 = vector.shape_cast %208 : vector<1x2x512xf32> to vector<2x512xf32>
    %cst_52 = arith.constant dense<0.000000e+00> : vector<2x512xf32>
    %210 = tpu.matmul %202, %0, %cst_52 {dimension_numbers = #tpu.dot_dimension_numbers<[1], [0], [0], [1], [0, 0, 1, 1], [], []>} : vector<2x128xf32>, vector<128x512xf32>, vector<2x512xf32> -> vector<2x512xf32>
    %211 = arith.addf %209, %210 : vector<2x512xf32>
    %212 = vector.extract_strided_slice %211 {offsets = [0, 0], sizes = [2, 128], strides = [1, 1]} : vector<2x512xf32> to vector<2x128xf32>
    %213 = arith.negf %212 : vector<2x128xf32>
    %214 = math.exp %213 : vector<2x128xf32>
    %cst_53 = arith.constant 1.000000e+00 : f32
    %215 = vector.broadcast %cst_53 : f32 to vector<2x128xf32>
    %216 = arith.addf %215, %214 : vector<2x128xf32>
    %217 = arith.divf %215, %216 : vector<2x128xf32>
    %218 = vector.extract_strided_slice %211 {offsets = [0, 128], sizes = [2, 128], strides = [1, 1]} : vector<2x512xf32> to vector<2x128xf32>
    %219 = arith.negf %218 : vector<2x128xf32>
    %220 = math.exp %219 : vector<2x128xf32>
    %cst_54 = arith.constant 1.000000e+00 : f32
    %221 = vector.broadcast %cst_54 : f32 to vector<2x128xf32>
    %222 = arith.addf %221, %220 : vector<2x128xf32>
    %223 = arith.divf %221, %222 : vector<2x128xf32>
    %224 = vector.extract_strided_slice %211 {offsets = [0, 256], sizes = [2, 128], strides = [1, 1]} : vector<2x512xf32> to vector<2x128xf32>
    %225 = math.tanh %224 : vector<2x128xf32>
    %226 = vector.extract_strided_slice %211 {offsets = [0, 384], sizes = [2, 128], strides = [1, 1]} : vector<2x512xf32> to vector<2x128xf32>
    %227 = arith.negf %226 : vector<2x128xf32>
    %228 = math.exp %227 : vector<2x128xf32>
    %cst_55 = arith.constant 1.000000e+00 : f32
    %229 = vector.broadcast %cst_55 : f32 to vector<2x128xf32>
    %230 = arith.addf %229, %228 : vector<2x128xf32>
    %231 = arith.divf %229, %230 : vector<2x128xf32>
    %232 = arith.mulf %223, %200 : vector<2x128xf32>
    %233 = arith.mulf %217, %225 : vector<2x128xf32>
    %234 = arith.addf %232, %233 : vector<2x128xf32>
    %235 = math.tanh %234 : vector<2x128xf32>
    %236 = arith.mulf %231, %235 : vector<2x128xf32>
    %237 = arith.index_cast %c6_i32 : i32 to index
    %c0_56 = arith.constant 0 : index
    %c0_57 = arith.constant 0 : index
    %238 = vector.load %arg2[%237, %c0_56, %c0_57] : memref<8x2x128xf32, #tpu.memory_space<vmem>>, vector<1x2x128xf32>
    %239 = vector.shape_cast %238 : vector<1x2x128xf32> to vector<2x128xf32>
    %240 = vector.shape_cast %236 : vector<2x128xf32> to vector<1x2x128xf32>
    tpu.vector_store %arg2[%237, %c0_56, %c0_57], %240 {strides = array<i32>} : memref<8x2x128xf32, #tpu.memory_space<vmem>>, vector<1x2x128xf32>,
    %c7_i32 = arith.constant 7 : i32
    %241 = arith.index_cast %c7_i32 : i32 to index
    %c0_58 = arith.constant 0 : index
    %c0_59 = arith.constant 0 : index
    %242 = vector.load %arg0[%241, %c0_58, %c0_59] : memref<8x2x512xf32, #tpu.memory_space<vmem>>, vector<1x2x512xf32>
    %243 = vector.shape_cast %242 : vector<1x2x512xf32> to vector<2x512xf32>
    %cst_60 = arith.constant dense<0.000000e+00> : vector<2x512xf32>
    %244 = tpu.matmul %236, %0, %cst_60 {dimension_numbers = #tpu.dot_dimension_numbers<[1], [0], [0], [1], [0, 0, 1, 1], [], []>} : vector<2x128xf32>, vector<128x512xf32>, vector<2x512xf32> -> vector<2x512xf32>
    %245 = arith.addf %243, %244 : vector<2x512xf32>
    %246 = vector.extract_strided_slice %245 {offsets = [0, 0], sizes = [2, 128], strides = [1, 1]} : vector<2x512xf32> to vector<2x128xf32>
    %247 = arith.negf %246 : vector<2x128xf32>
    %248 = math.exp %247 : vector<2x128xf32>
    %cst_61 = arith.constant 1.000000e+00 : f32
    %249 = vector.broadcast %cst_61 : f32 to vector<2x128xf32>
    %250 = arith.addf %249, %248 : vector<2x128xf32>
    %251 = arith.divf %249, %250 : vector<2x128xf32>
    %252 = vector.extract_strided_slice %245 {offsets = [0, 128], sizes = [2, 128], strides = [1, 1]} : vector<2x512xf32> to vector<2x128xf32>
    %253 = arith.negf %252 : vector<2x128xf32>
    %254 = math.exp %253 : vector<2x128xf32>
    %cst_62 = arith.constant 1.000000e+00 : f32
    %255 = vector.broadcast %cst_62 : f32 to vector<2x128xf32>
    %256 = arith.addf %255, %254 : vector<2x128xf32>
    %257 = arith.divf %255, %256 : vector<2x128xf32>
    %258 = vector.extract_strided_slice %245 {offsets = [0, 256], sizes = [2, 128], strides = [1, 1]} : vector<2x512xf32> to vector<2x128xf32>
    %259 = math.tanh %258 : vector<2x128xf32>
    %260 = vector.extract_strided_slice %245 {offsets = [0, 384], sizes = [2, 128], strides = [1, 1]} : vector<2x512xf32> to vector<2x128xf32>
    %261 = arith.negf %260 : vector<2x128xf32>
    %262 = math.exp %261 : vector<2x128xf32>
    %cst_63 = arith.constant 1.000000e+00 : f32
    %263 = vector.broadcast %cst_63 : f32 to vector<2x128xf32>
    %264 = arith.addf %263, %262 : vector<2x128xf32>
    %265 = arith.divf %263, %264 : vector<2x128xf32>
    %266 = arith.mulf %257, %234 : vector<2x128xf32>
    %267 = arith.mulf %251, %259 : vector<2x128xf32>
    %268 = arith.addf %266, %267 : vector<2x128xf32>
    %269 = math.tanh %268 : vector<2x128xf32>
    %270 = arith.mulf %265, %269 : vector<2x128xf32>
    %271 = arith.index_cast %c7_i32 : i32 to index
    %c0_64 = arith.constant 0 : index
    %c0_65 = arith.constant 0 : index
    %272 = vector.load %arg2[%271, %c0_64, %c0_65] : memref<8x2x128xf32, #tpu.memory_space<vmem>>, vector<1x2x128xf32>
    %273 = vector.shape_cast %272 : vector<1x2x128xf32> to vector<2x128xf32>
    %274 = vector.shape_cast %270 : vector<2x128xf32> to vector<1x2x128xf32>
    tpu.vector_store %arg2[%271, %c0_64, %c0_65], %274 {strides = array<i32>} : memref<8x2x128xf32, #tpu.memory_space<vmem>>, vector<1x2x128xf32>,
    %c8_i32 = arith.constant 8 : i32
    %c0_66 = arith.constant 0 : index
    %c0_67 = arith.constant 0 : index
    %275 = vector.load %arg3[%c0_66, %c0_67] : memref<2x128xf32, #tpu.memory_space<vmem>>, vector<2x128xf32>
    tpu.vector_store %arg3[%c0_66, %c0_67], %270 {strides = array<i32>} : memref<2x128xf32, #tpu.memory_space<vmem>>, vector<2x128xf32>,
    %c0_68 = arith.constant 0 : index
    %c0_69 = arith.constant 0 : index
    %276 = vector.load %arg4[%c0_68, %c0_69] : memref<2x128xf32, #tpu.memory_space<vmem>>, vector<2x128xf32>
    tpu.vector_store %arg4[%c0_68, %c0_69], %268 {strides = array<i32>} : memref<2x128xf32, #tpu.memory_space<vmem>>, vector<2x128xf32>,
    return
  }
}

module attributes {stable_mosaic.version = 11 : i64} {
  func.func @_epilogue_kernel(%arg0: memref<16x64xf32, #tpu.memory_space<vmem>>, %arg1: memref<64x64xf32, #tpu.memory_space<vmem>>, %arg2: memref<2x64xf32, #tpu.memory_space<vmem>>, %arg3: memref<64x32xf32, #tpu.memory_space<vmem>>, %arg4: memref<1x32xf32, #tpu.memory_space<vmem>>, %arg5: memref<2x64xf32, #tpu.memory_space<vmem>>, %arg6: memref<64x32xf32, #tpu.memory_space<vmem>>, %arg7: memref<1x32xf32, #tpu.memory_space<vmem>>, %arg8: memref<16x64xf32, #tpu.memory_space<vmem>>, %arg9: memref<2x32xf32, #tpu.memory_space<vmem>>, %arg10: memref<2x32xf32, #tpu.memory_space<vmem>>) attributes {dimension_semantics = [], scalar_prefetch = 0 : i64, scratch_operands = 0 : i64, tpu.core_type = #tpu.core_type<tc>} {
    %c0 = arith.constant 0 : index
    %c0_0 = arith.constant 0 : index
    %0 = vector.load %arg0[%c0, %c0_0] : memref<16x64xf32, #tpu.memory_space<vmem>>, vector<16x64xf32>
    %c0_1 = arith.constant 0 : index
    %c0_2 = arith.constant 0 : index
    %1 = vector.load %arg1[%c0_1, %c0_2] : memref<64x64xf32, #tpu.memory_space<vmem>>, vector<64x64xf32>
    %cst = arith.constant dense<0.000000e+00> : vector<16x64xf32>
    %2 = tpu.matmul %0, %1, %cst {dimension_numbers = #tpu.dot_dimension_numbers<[1], [0], [0], [1], [0, 0, 1, 1], [], []>} : vector<16x64xf32>, vector<64x64xf32>, vector<16x64xf32> -> vector<16x64xf32>
    %c0_3 = arith.constant 0 : index
    %c0_4 = arith.constant 0 : index
    %3 = vector.load %arg8[%c0_3, %c0_4] : memref<16x64xf32, #tpu.memory_space<vmem>>, vector<16x64xf32>
    tpu.vector_store %arg8[%c0_3, %c0_4], %2 {strides = array<i32>} : memref<16x64xf32, #tpu.memory_space<vmem>>, vector<16x64xf32>,
    %c0_5 = arith.constant 0 : index
    %c0_6 = arith.constant 0 : index
    %4 = vector.load %arg2[%c0_5, %c0_6] : memref<2x64xf32, #tpu.memory_space<vmem>>, vector<2x64xf32>
    %c0_7 = arith.constant 0 : index
    %c0_8 = arith.constant 0 : index
    %5 = vector.load %arg3[%c0_7, %c0_8] : memref<64x32xf32, #tpu.memory_space<vmem>>, vector<64x32xf32>
    %cst_9 = arith.constant dense<0.000000e+00> : vector<2x32xf32>
    %6 = tpu.matmul %4, %5, %cst_9 {dimension_numbers = #tpu.dot_dimension_numbers<[1], [0], [0], [1], [0, 0, 1, 1], [], []>} : vector<2x64xf32>, vector<64x32xf32>, vector<2x32xf32> -> vector<2x32xf32>
    %c0_10 = arith.constant 0 : index
    %c0_11 = arith.constant 0 : index
    %7 = vector.load %arg4[%c0_10, %c0_11] : memref<1x32xf32, #tpu.memory_space<vmem>>, vector<1x32xf32>
    %8 = vector.broadcast %7 : vector<1x32xf32> to vector<2x32xf32>
    %9 = arith.addf %6, %8 : vector<2x32xf32>
    %cst_12 = arith.constant 0.000000e+00 : f32
    %10 = vector.broadcast %cst_12 : f32 to vector<2x32xf32>
    %11 = arith.maximumf %9, %10 : vector<2x32xf32>
    %c0_13 = arith.constant 0 : index
    %c0_14 = arith.constant 0 : index
    %12 = vector.load %arg9[%c0_13, %c0_14] : memref<2x32xf32, #tpu.memory_space<vmem>>, vector<2x32xf32>
    tpu.vector_store %arg9[%c0_13, %c0_14], %11 {strides = array<i32>} : memref<2x32xf32, #tpu.memory_space<vmem>>, vector<2x32xf32>,
    %c0_15 = arith.constant 0 : index
    %c0_16 = arith.constant 0 : index
    %13 = vector.load %arg5[%c0_15, %c0_16] : memref<2x64xf32, #tpu.memory_space<vmem>>, vector<2x64xf32>
    %c0_17 = arith.constant 0 : index
    %c0_18 = arith.constant 0 : index
    %14 = vector.load %arg6[%c0_17, %c0_18] : memref<64x32xf32, #tpu.memory_space<vmem>>, vector<64x32xf32>
    %cst_19 = arith.constant dense<0.000000e+00> : vector<2x32xf32>
    %15 = tpu.matmul %13, %14, %cst_19 {dimension_numbers = #tpu.dot_dimension_numbers<[1], [0], [0], [1], [0, 0, 1, 1], [], []>} : vector<2x64xf32>, vector<64x32xf32>, vector<2x32xf32> -> vector<2x32xf32>
    %c0_20 = arith.constant 0 : index
    %c0_21 = arith.constant 0 : index
    %16 = vector.load %arg7[%c0_20, %c0_21] : memref<1x32xf32, #tpu.memory_space<vmem>>, vector<1x32xf32>
    %17 = vector.broadcast %16 : vector<1x32xf32> to vector<2x32xf32>
    %18 = arith.addf %15, %17 : vector<2x32xf32>
    %cst_22 = arith.constant 0.000000e+00 : f32
    %19 = vector.broadcast %cst_22 : f32 to vector<2x32xf32>
    %20 = arith.maximumf %18, %19 : vector<2x32xf32>
    %c0_23 = arith.constant 0 : index
    %c0_24 = arith.constant 0 : index
    %21 = vector.load %arg10[%c0_23, %c0_24] : memref<2x32xf32, #tpu.memory_space<vmem>>, vector<2x32xf32>
    tpu.vector_store %arg10[%c0_23, %c0_24], %20 {strides = array<i32>} : memref<2x32xf32, #tpu.memory_space<vmem>>, vector<2x32xf32>,
    return
  }
}

</mosaic_0001>

<llo_original>
// kernel: encoder_forward.3
$region0: #{encoder_forward.3}
  #allocation0 [shape = 'u32[]', space=smem, size = 0x4, offset = 0x4, fixed_abs, tag = 'smem constant byte address 0x4 - core index']
  #allocation1 [shape = 'u32[144,128]{1,0:T(1,128)}', space=vmem, size = 0x12000, scoped, tag = 'internal scratch']
  %s0 = inlined_call_operand.vmem [shape: f32[16,64], index: 0, kind: input, shape index: {}]
  %s1 = inlined_call_operand.vmem [shape: f32[64,512], index: 1, kind: input, shape index: {}]
  %s2 = inlined_call_operand.vmem [shape: f32[1,512], index: 2, kind: input, shape index: {}]
  %s3 = inlined_call_operand.vmem [shape: f32[16,512], index: 3, kind: output, shape index: {}]
  %s4 = sld [smem:[#allocation0]]
  $region22: #{encoder_forward.3} parent=0
    _
  %s6 = ssub.s32 1, %s4
  %s7 = scalar_select 0, %s6, %s4
  // Predicated region
  $region2: #{encoder_forward.3} parent=0 // pred_check
    _
  $region3: #{encoder_forward.3} parent=0 // pred_check_branch
    %9 = sbr.rel (0) target = $region5
  $region4: #{encoder_forward.3} parent=0 // pred_region
    _
  $region5: #{encoder_forward.3} parent=0 // pred_fallthru
    _
  // Predicated region
  $region6: #{encoder_forward.3} parent=0 // pred_check
    _
  $region7: #{encoder_forward.3} parent=0 // pred_check_branch
    %11 = sbr.rel (0) target = $region9
  $region8: #{encoder_forward.3} parent=0 // pred_region
    _
  $region9: #{encoder_forward.3} parent=0 // pred_fallthru
    _
  // Predicated region
  $region10: #{encoder_forward.3} parent=0 // pred_check
    _
  $region11: #{encoder_forward.3} parent=0 // pred_check_branch
    %13 = sbr.rel (0) target = $region13
  $region12: #{encoder_forward.3} parent=0 // pred_region
    _
  $region13: #{encoder_forward.3} parent=0 // pred_fallthru
    _
  %v14 = vld [vmem:[%s0] sm:$0xff]
  %v15 = vld [vmem:[%s0 + $0x8] sm:$0xff]
  %v16 = vld [vmem:[%s1] sm:$0xff]
  %v17 = vld [vmem:[%s1 + $0x8] sm:$0xff]
  %v18 = vld [vmem:[%s1 + $0x10] sm:$0xff]
  %v19 = vld [vmem:[%s1 + $0x18] sm:$0xff]
  %v20 = vld [vmem:[%s1 + $0x20] sm:$0xff]
  %v21 = vld [vmem:[%s1 + $0x28] sm:$0xff]
  %v22 = vld [vmem:[%s1 + $0x30] sm:$0xff]
  %v23 = vld [vmem:[%s1 + $0x38] sm:$0xff]
  %v24 = vld [vmem:[%s1 + $0x40] sm:$0xff]
  %v25 = vld [vmem:[%s1 + $0x48] sm:$0xff]
  %v26 = vld [vmem:[%s1 + $0x50] sm:$0xff]
  %v27 = vld [vmem:[%s1 + $0x58] sm:$0xff]
  %v28 = vld [vmem:[%s1 + $0x60] sm:$0xff]
  %v29 = vld [vmem:[%s1 + $0x68] sm:$0xff]
  %v30 = vld [vmem:[%s1 + $0x70] sm:$0xff]
  %v31 = vld [vmem:[%s1 + $0x78] sm:$0xff]
  %v32 = vld [vmem:[%s1 + $0x80] sm:$0xff]
  %v33 = vld [vmem:[%s1 + $0x88] sm:$0xff]
  %v34 = vld [vmem:[%s1 + $0x90] sm:$0xff]
  %v35 = vld [vmem:[%s1 + $0x98] sm:$0xff]
  %v36 = vld [vmem:[%s1 + $0xa0] sm:$0xff]
  %v37 = vld [vmem:[%s1 + $0xa8] sm:$0xff]
  %v38 = vld [vmem:[%s1 + $0xb0] sm:$0xff]
  %v39 = vld [vmem:[%s1 + $0xb8] sm:$0xff]
  %v40 = vld [vmem:[%s1 + $0xc0] sm:$0xff]
  %v41 = vld [vmem:[%s1 + $0xc8] sm:$0xff]
  %v42 = vld [vmem:[%s1 + $0xd0] sm:$0xff]
  %v43 = vld [vmem:[%s1 + $0xd8] sm:$0xff]
  %v44 = vld [vmem:[%s1 + $0xe0] sm:$0xff]
  %v45 = vld [vmem:[%s1 + $0xe8] sm:$0xff]
  %v46 = vld [vmem:[%s1 + $0xf0] sm:$0xff]
  %v47 = vld [vmem:[%s1 + $0xf8] sm:$0xff]
  %v48 = vld [vmem:[%s2] sm:$0xf]
  %v50 = vlaneseq
  %v51 = vshrl.u32 %v50, 7
  %v52 = vsub.s32 0, %v51
  %v53 = vrot.slane %v48, %v52
  %v54 = vlaneseq
  %v55 = vshrl.u32 %v54, 7
  %v56 = vsub.s32 1, %v55
  %v57 = vrot.slane %v48, %v56
  %v58 = vlaneseq
  %v59 = vshrl.u32 %v58, 7
  %v60 = vsub.s32 2, %v59
  %v61 = vrot.slane %v48, %v60
  %v62 = vlaneseq
  %v63 = vshrl.u32 %v62, 7
  %v64 = vsub.s32 3, %v63
  %v65 = vrot.slane %v48, %v64
  %vm70 = vcmask 523264
  %v72 = vsel %vm70, %v14, 0
  %v75 = vsel %vm70, %v15, 0
  %77 = vmatprep.subr.mxu0 %v17
  %78 = vmatpush1.msra.mxu0 %v16
  %79 = vmatprep.subr.mxu0 %v21
  %80 = vmatpush1.msra.mxu0 %v20
  %81 = vmatprep.subr.mxu0 %v25
  %82 = vmatpush1.msra.mxu0 %v24
  %83 = vmatprep.subr.mxu0 %v29
  %84 = vmatpush1.msra.mxu0 %v28
  %85 = vmatprep.subr.mxu0 %v33
  %86 = vmatpush1.msra.mxu0 %v32
  %87 = vmatprep.subr.mxu0 %v37
  %88 = vmatpush1.msra.mxu0 %v36
  %89 = vmatprep.subr.mxu0 %v41
  %90 = vmatpush1.msra.mxu0 %v40
  %91 = vmatprep.subr.mxu0 %v45
  %92 = vmatpush1.msra.mxu0 %v44
  %93 = vmatprep.subr.mxu0 0.0
  %94 = vmatpush1.msra.mxu0 0.0
  %95 = vmatprep.subr.mxu0 0.0
  %96 = vmatpush1.msra.mxu0 0.0
  %97 = vmatprep.subr.mxu0 0.0
  %98 = vmatpush1.msra.mxu0 0.0
  %99 = vmatprep.subr.mxu0 0.0
  %100 = vmatpush1.msra.mxu0 0.0
  %101 = vmatprep.subr.mxu0 0.0
  %102 = vmatpush1.msra.mxu0 0.0
  %103 = vmatprep.subr.mxu0 0.0
  %104 = vmatpush1.msra.mxu0 0.0
  %105 = vmatprep.subr.mxu0 0.0
  %106 = vmatpush1.msra.mxu0 0.0
  %107 = vmatprep.subr.mxu0 0.0
  %108 = vmatpush1.msra.mxu0 0.0
  %109 = vmatprep.subr.mxu0 0.0
  %110 = vmatpush1.msra.mxu0 0.0
  %111 = vmatprep.subr.mxu0 0.0
  %112 = vmatpush1.msra.mxu0 0.0
  %113 = vmatprep.subr.mxu0 0.0
  %114 = vmatpush1.msra.mxu0 0.0
  %115 = vmatprep.subr.mxu0 0.0
  %116 = vmatpush1.msra.mxu0 0.0
  %117 = vmatprep.subr.mxu0 0.0
  %118 = vmatpush1.msra.mxu0 0.0
  %119 = vmatprep.subr.mxu0 0.0
  %120 = vmatpush1.msra.mxu0 0.0
  %121 = vmatprep.subr.mxu0 0.0
  %122 = vmatpush1.msra.mxu0 0.0
  %123 = vmatprep.subr.mxu0 0.0
  %124 = vmatpush1.msra.mxu0 0.0
  %125 = vmatprep.subr.mxu0 0.0
  %126 = vmatpush1.msra.mxu0 0.0
  %127 = vmatprep.subr.mxu0 0.0
  %128 = vmatpush1.msra.mxu0 0.0
  %129 = vmatprep.subr.mxu0 0.0
  %130 = vmatpush1.msra.mxu0 0.0
  %131 = vmatprep.subr.mxu0 0.0
  %132 = vmatpush1.msra.mxu0 0.0
  %133 = vmatprep.subr.mxu0 0.0
  %134 = vmatpush1.msra.mxu0 0.0
  %135 = vmatprep.subr.mxu0 0.0
  %136 = vmatpush1.msra.mxu0 0.0
  %137 = vmatprep.subr.mxu0 0.0
  %138 = vmatpush1.msra.mxu0 0.0
  %139 = vmatprep.subr.mxu0 0.0
  %140 = vmatpush1.msra.mxu0 0.0
  %141 = vmatprep.mubr.f32.mxu0 0.0
  %142 = vmatmul.mubr.f32.gmra.mrb[0].mxu0 %v72
  %v143 = vpop.f32.mrb[0].mxu0
  %v144 = vadd.f32 %v53, %v143
  %v145 = vpop.f32.mrb[0].mxu0
  %v146 = vadd.f32 %v57, %v145
  %147 = vmatprep.mubr.f32.mxu0 0.0
  %148 = vmatmul.mubr.f32.gmra.mrb[0].mxu0 %v75
  %v149 = vpop.f32.mrb[0].mxu0
  %v150 = vadd.f32 %v53, %v149
  %v151 = vpop.f32.mrb[0].mxu0
  %v152 = vadd.f32 %v57, %v151
  %153 = vdwg.mxu0
  %154 = vmatprep.subr.mxu0 %v19
  %155 = vmatpush1.msra.mxu0 %v18
  %156 = vmatprep.subr.mxu0 %v23
  %157 = vmatpush1.msra.mxu0 %v22
  %158 = vmatprep.subr.mxu0 %v27
  %159 = vmatpush1.msra.mxu0 %v26
  %160 = vmatprep.subr.mxu0 %v31
  %161 = vmatpush1.msra.mxu0 %v30
  %162 = vmatprep.subr.mxu0 %v35
  %163 = vmatpush1.msra.mxu0 %v34
  %164 = vmatprep.subr.mxu0 %v39
  %165 = vmatpush1.msra.mxu0 %v38
  %166 = vmatprep.subr.mxu0 %v43
  %167 = vmatpush1.msra.mxu0 %v42
  %168 = vmatprep.subr.mxu0 %v47
  %169 = vmatpush1.msra.mxu0 %v46
  %170 = vmatprep.subr.mxu0 0.0
  %171 = vmatpush1.msra.mxu0 0.0
  %172 = vmatprep.subr.mxu0 0.0
  %173 = vmatpush1.msra.mxu0 0.0
  %174 = vmatprep.subr.mxu0 0.0
  %175 = vmatpush1.msra.mxu0 0.0
  %176 = vmatprep.subr.mxu0 0.0
  %177 = vmatpush1.msra.mxu0 0.0
  %178 = vmatprep.subr.mxu0 0.0
  %179 = vmatpush1.msra.mxu0 0.0
  %180 = vmatprep.subr.mxu0 0.0
  %181 = vmatpush1.msra.mxu0 0.0
  %182 = vmatprep.subr.mxu0 0.0
  %183 = vmatpush1.msra.mxu0 0.0
  %184 = vmatprep.subr.mxu0 0.0
  %185 = vmatpush1.msra.mxu0 0.0
  %186 = vmatprep.subr.mxu0 0.0
  %187 = vmatpush1.msra.mxu0 0.0
  %188 = vmatprep.subr.mxu0 0.0
  %189 = vmatpush1.msra.mxu0 0.0
  %190 = vmatprep.subr.mxu0 0.0
  %191 = vmatpush1.msra.mxu0 0.0
  %192 = vmatprep.subr.mxu0 0.0
  %193 = vmatpush1.msra.mxu0 0.0
  %194 = vmatprep.subr.mxu0 0.0
  %195 = vmatpush1.msra.mxu0 0.0
  %196 = vmatprep.subr.mxu0 0.0
  %197 = vmatpush1.msra.mxu0 0.0
  %198 = vmatprep.subr.mxu0 0.0
  %199 = vmatpush1.msra.mxu0 0.0
  %200 = vmatprep.subr.mxu0 0.0
  %201 = vmatpush1.msra.mxu0 0.0
  %202 = vmatprep.subr.mxu0 0.0
  %203 = vmatpush1.msra.mxu0 0.0
  %204 = vmatprep.subr.mxu0 0.0
  %205 = vmatpush1.msra.mxu0 0.0
  %206 = vmatprep.subr.mxu0 0.0
  %207 = vmatpush1.msra.mxu0 0.0
  %208 = vmatprep.subr.mxu0 0.0
  %209 = vmatpush1.msra.mxu0 0.0
  %210 = vmatprep.subr.mxu0 0.0
  %211 = vmatpush1.msra.mxu0 0.0
  %212 = vmatprep.subr.mxu0 0.0
  %213 = vmatpush1.msra.mxu0 0.0
  %214 = vmatprep.subr.mxu0 0.0
  %215 = vmatpush1.msra.mxu0 0.0
  %216 = vmatprep.subr.mxu0 0.0
  %217 = vmatpush1.msra.mxu0 0.0
  %218 = vmatprep.mubr.f32.mxu0 0.0
  %219 = vmatmul.mubr.f32.gmra.mrb[0].mxu0 %v72
  %v220 = vpop.f32.mrb[0].mxu0
  %v221 = vadd.f32 %v61, %v220
  %v222 = vpop.f32.mrb[0].mxu0
  %v223 = vadd.f32 %v65, %v222
  %224 = vmatprep.mubr.f32.mxu0 0.0
  %225 = vmatmul.mubr.f32.gmra.mrb[0].mxu0 %v75
  %v226 = vpop.f32.mrb[0].mxu0
  %v227 = vadd.f32 %v61, %v226
  %v228 = vpop.f32.mrb[0].mxu0
  %v229 = vadd.f32 %v65, %v228
  %230 = vdwg.mxu0
  %231 = vst [vmem:[%s3] sm:$0xff] %v144
  %232 = vst [vmem:[%s3 + $0x8] sm:$0xff] %v146
  %233 = vst [vmem:[%s3 + $0x10] sm:$0xff] %v221
  %234 = vst [vmem:[%s3 + $0x18] sm:$0xff] %v223
  %235 = vst [vmem:[%s3 + $0x20] sm:$0xff] %v150
  %236 = vst [vmem:[%s3 + $0x28] sm:$0xff] %v152
  %237 = vst [vmem:[%s3 + $0x30] sm:$0xff] %v227
  %238 = vst [vmem:[%s3 + $0x38] sm:$0xff] %v229
  // Predicated region
  $region14: #{encoder_forward.3} parent=0 // pred_check
    _
  $region15: #{encoder_forward.3} parent=0 // pred_check_branch
    %240 = sbr.rel (0) target = $region17
  $region16: #{encoder_forward.3} parent=0 // pred_region
    _
  $region17: #{encoder_forward.3} parent=0 // pred_fallthru
    _
  // Predicated region
  $region18: #{encoder_forward.3} parent=0 // pred_check
    _
  $region19: #{encoder_forward.3} parent=0 // pred_check_branch
    %242 = sbr.rel (0) target = $region21
  $region20: #{encoder_forward.3} parent=0 // pred_region
    _
  $region21: #{encoder_forward.3} parent=0 // pred_fallthru
    _

// kernel: encoder_forward.5
$region0: #{encoder_forward.5}
  #allocation0 [shape = 'u32[]', space=smem, size = 0x4, offset = 0x4, fixed_abs, tag = 'smem constant byte address 0x4 - core index']
  #allocation1 [shape = 'u32[144,128]{1,0:T(1,128)}', space=vmem, size = 0x12000, scoped, tag = 'internal scratch']
  %s0 = inlined_call_operand.vmem [shape: f32[16,64], index: 0, kind: input, shape index: {}]
  %s1 = inlined_call_operand.vmem [shape: f32[64,64], index: 1, kind: input, shape index: {}]
  %s2 = inlined_call_operand.vmem [shape: f32[2,64], index: 2, kind: input, shape index: {}]
  %s3 = inlined_call_operand.vmem [shape: f32[64,32], index: 3, kind: input, shape index: {}]
  %s4 = inlined_call_operand.vmem [shape: f32[1,32], index: 4, kind: input, shape index: {}, may-alias: {4,7}]
  %s5 = inlined_call_operand.vmem [shape: f32[2,64], index: 5, kind: input, shape index: {}]
  %s6 = inlined_call_operand.vmem [shape: f32[64,32], index: 6, kind: input, shape index: {}]
  %s7 = inlined_call_operand.vmem [shape: f32[1,32], index: 7, kind: input, shape index: {}, may-alias: {4,7}]
  %s8 = inlined_call_operand.hbm [shape: f32[16,64], index: 8, kind: output, shape index: {0}]
  %s9 = inlined_call_operand.hbm [shape: f32[2,32], index: 9, kind: output, shape index: {1}]
  %s10 = inlined_call_operand.hbm [shape: f32[2,32], index: 10, kind: output, shape index: {2}]
  %11 = xla_tuple %s8, %s9, %s10
  %s12 = sld [smem:[#allocation0]]
  $region58: #{encoder_forward.5} parent=0
    _
  %s14 = ssub.s32 1, %s12
  %s15 = scalar_select 0, %s14, %s12
  $region1: #{encoder_forward.5} parent=0
    #allocation2 [shape = 'u8[8192]{0}', space=vmem, size = 0x2000, scoped, tag = 'output window, operand 0, single buffered']
    #allocation3 [shape = 's32[1]{0}', space=sflag, size = 0x4, scoped, tag = 'scoped memory for encoder_forward.5']
    #allocation4 [shape = 'u8[1024]{0}', space=vmem, size = 0x400, scoped, tag = 'output window, operand 1, single buffered']
    #allocation5 [shape = 's32[1]{0}', space=sflag, size = 0x4, scoped, tag = 'scoped memory for encoder_forward.5']
    #allocation6 [shape = 'u8[1024]{0}', space=vmem, size = 0x400, scoped, tag = 'output window, operand 2, single buffered']
    %16 = vsyncpa [#allocation3], 0
    %17 = vsyncpa [#allocation5], 0
    // Predicated region
    $region2: #{encoder_forward.5} parent=1 // pred_check
      _
    $region3: #{encoder_forward.5} parent=1 // pred_check_branch
      %19 = sbr.rel (0) target = $region5
    $region4: #{encoder_forward.5} parent=1 // pred_region
      _
    $region5: #{encoder_forward.5} parent=1 // pred_fallthru
      _
    // Predicated region
    $region6: #{encoder_forward.5} parent=1 // pred_check
      _
    $region7: #{encoder_forward.5} parent=1 // pred_check_branch
      %21 = sbr.rel (0) target = $region9
    $region8: #{encoder_forward.5} parent=1 // pred_region
      _
    $region9: #{encoder_forward.5} parent=1 // pred_fallthru
      _
    // Predicated region
    $region10: #{encoder_forward.5} parent=1 // pred_check
      _
    $region11: #{encoder_forward.5} parent=1 // pred_check_branch
      %23 = sbr.rel (0) target = $region13
    $region12: #{encoder_forward.5} parent=1 // pred_region
      _
    $region13: #{encoder_forward.5} parent=1 // pred_fallthru
      _
    // Predicated region
    $region14: #{encoder_forward.5} parent=1 // pred_check
      _
    $region15: #{encoder_forward.5} parent=1 // pred_check_branch
      %25 = sbr.rel (0) target = $region17
    $region16: #{encoder_forward.5} parent=1 // pred_region
      _
    $region17: #{encoder_forward.5} parent=1 // pred_fallthru
      _
    // Predicated region
    $region18: #{encoder_forward.5} parent=1 // pred_check
      _
    $region19: #{encoder_forward.5} parent=1 // pred_check_branch
      %27 = sbr.rel (0) target = $region21
    $region20: #{encoder_forward.5} parent=1 // pred_region
      _
    $region21: #{encoder_forward.5} parent=1 // pred_fallthru
      _
    // Predicated region
    $region22: #{encoder_forward.5} parent=1 // pred_check
      _
    $region23: #{encoder_forward.5} parent=1 // pred_check_branch
      %29 = sbr.rel (0) target = $region25
    $region24: #{encoder_forward.5} parent=1 // pred_region
      _
    $region25: #{encoder_forward.5} parent=1 // pred_fallthru
      _
    // Predicated region
    $region26: #{encoder_forward.5} parent=1 // pred_check
      _
    $region27: #{encoder_forward.5} parent=1 // pred_check_branch
      %31 = sbr.rel (0) target = $region29
    $region28: #{encoder_forward.5} parent=1 // pred_region
      _
    $region29: #{encoder_forward.5} parent=1 // pred_fallthru
      _
    // Predicated region
    $region30: #{encoder_forward.5} parent=1 // pred_check
      _
    $region31: #{encoder_forward.5} parent=1 // pred_check_branch
      %33 = sbr.rel (0) target = $region33
    $region32: #{encoder_forward.5} parent=1 // pred_region
      _
    $region33: #{encoder_forward.5} parent=1 // pred_fallthru
      _
    %v34 = vld [vmem:[%s0] sm:$0xff]
    %v35 = vld [vmem:[%s0 + $0x8] sm:$0xff]
    %v36 = vld [vmem:[%s1] sm:$0xff]
    %v37 = vld [vmem:[%s1 + $0x8] sm:$0xff]
    %v38 = vld [vmem:[%s1 + $0x10] sm:$0xff]
    %v39 = vld [vmem:[%s1 + $0x18] sm:$0xff]
    %v40 = vld [vmem:[%s1 + $0x20] sm:$0xff]
    %v41 = vld [vmem:[%s1 + $0x28] sm:$0xff]
    %v42 = vld [vmem:[%s1 + $0x30] sm:$0xff]
    %v43 = vld [vmem:[%s1 + $0x38] sm:$0xff]
    %vm44 = vcmask 523264
    %v46 = vsel %vm44, %v34, 0
    %v49 = vsel %vm44, %v35, 0
    %51 = vmatprep.subr.mxu0 0.0
    %52 = vmatpush1.msra.mxu0 %v36
    %53 = vmatprep.subr.mxu0 0.0
    %54 = vmatpush1.msra.mxu0 %v37
    %55 = vmatprep.subr.mxu0 0.0
    %56 = vmatpush1.msra.mxu0 %v38
    %57 = vmatprep.subr.mxu0 0.0
    %58 = vmatpush1.msra.mxu0 %v39
    %59 = vmatprep.subr.mxu0 0.0
    %60 = vmatpush1.msra.mxu0 %v40
    %61 = vmatprep.subr.mxu0 0.0
    %62 = vmatpush1.msra.mxu0 %v41
    %63 = vmatprep.subr.mxu0 0.0
    %64 = vmatpush1.msra.mxu0 %v42
    %65 = vmatprep.subr.mxu0 0.0
    %66 = vmatpush1.msra.mxu0 %v43
    %67 = vmatprep.subr.mxu0 0.0
    %68 = vmatpush1.msra.mxu0 0.0
    %69 = vmatprep.subr.mxu0 0.0
    %70 = vmatpush1.msra.mxu0 0.0
    %71 = vmatprep.subr.mxu0 0.0
    %72 = vmatpush1.msra.mxu0 0.0
    %73 = vmatprep.subr.mxu0 0.0
    %74 = vmatpush1.msra.mxu0 0.0
    %75 = vmatprep.subr.mxu0 0.0
    %76 = vmatpush1.msra.mxu0 0.0
    %77 = vmatprep.subr.mxu0 0.0
    %78 = vmatpush1.msra.mxu0 0.0
    %79 = vmatprep.subr.mxu0 0.0
    %80 = vmatpush1.msra.mxu0 0.0
    %81 = vmatprep.subr.mxu0 0.0
    %82 = vmatpush1.msra.mxu0 0.0
    %83 = vmatprep.subr.mxu0 0.0
    %84 = vmatpush1.msra.mxu0 0.0
    %85 = vmatprep.subr.mxu0 0.0
    %86 = vmatpush1.msra.mxu0 0.0
    %87 = vmatprep.subr.mxu0 0.0
    %88 = vmatpush1.msra.mxu0 0.0
    %89 = vmatprep.subr.mxu0 0.0
    %90 = vmatpush1.msra.mxu0 0.0
    %91 = vmatprep.subr.mxu0 0.0
    %92 = vmatpush1.msra.mxu0 0.0
    %93 = vmatprep.subr.mxu0 0.0
    %94 = vmatpush1.msra.mxu0 0.0
    %95 = vmatprep.subr.mxu0 0.0
    %96 = vmatpush1.msra.mxu0 0.0
    %97 = vmatprep.subr.mxu0 0.0
    %98 = vmatpush1.msra.mxu0 0.0
    %99 = vmatprep.subr.mxu0 0.0
    %100 = vmatpush1.msra.mxu0 0.0
    %101 = vmatprep.subr.mxu0 0.0
    %102 = vmatpush1.msra.mxu0 0.0
    %103 = vmatprep.subr.mxu0 0.0
    %104 = vmatpush1.msra.mxu0 0.0
    %105 = vmatprep.subr.mxu0 0.0
    %106 = vmatpush1.msra.mxu0 0.0
    %107 = vmatprep.subr.mxu0 0.0
    %108 = vmatpush1.msra.mxu0 0.0
    %109 = vmatprep.subr.mxu0 0.0
    %110 = vmatpush1.msra.mxu0 0.0
    %111 = vmatprep.subr.mxu0 0.0
    %112 = vmatpush1.msra.mxu0 0.0
    %113 = vmatprep.subr.mxu0 0.0
    %114 = vmatpush1.msra.mxu0 0.0
    %115 = vmatprep.mubr.f32.mxu0 0.0
    %116 = vmatmul.mubr.f32.gmra.mrb[0].mxu0 %v46
    %v117 = vpop.f32.mrb[0].mxu0
    %v118 = vadd.f32 0.0, %v117
    %v119 = vpop.f32.mrb[0].mxu0
    %120 = vmatprep.mubr.f32.mxu0 0.0
    %121 = vmatmul.mubr.f32.gmra.mrb[0].mxu0 %v49
    %v122 = vpop.f32.mrb[0].mxu0
    %v123 = vadd.f32 0.0, %v122
    %v124 = vpop.f32.mrb[0].mxu0
    %125 = vdwg.mxu0
    %126 = vst.msk [vmem:[#allocation2] sm:$0xff] %vm44, %v118
    %127 = vst.msk [vmem:[#allocation2 + $0x8] sm:$0xff] %vm44, %v123
    %v128 = vld [vmem:[%s2] sm:$0x3]
    %v129 = vld [vmem:[%s3] sm:$0xff]
    %v130 = vld [vmem:[%s3 + $0x8] sm:$0xff]
    %v131 = vld [vmem:[%s3 + $0x10] sm:$0xff]
    %v132 = vld [vmem:[%s3 + $0x18] sm:$0xff]
    %v133 = vld [vmem:[%s3 + $0x20] sm:$0xff]
    %v134 = vld [vmem:[%s3 + $0x28] sm:$0xff]
    %v135 = vld [vmem:[%s3 + $0x30] sm:$0xff]
    %v136 = vld [vmem:[%s3 + $0x38] sm:$0xff]
    %v137 = vld [vmem:[%s4] sm:$0x1]
    %v139 = vlaneseq
    %v140 = vshrl.u32 %v139, 7
    %v141 = vsub.s32 0, %v140
    %v142 = vrot.slane %v137, %v141
    %v145 = vsel %vm44, %v128, 0
    %147 = vmatprep.subr.mxu0 0.0
    %148 = vmatpush1.msra.mxu0 %v129
    %149 = vmatprep.subr.mxu0 0.0
    %150 = vmatpush1.msra.mxu0 %v130
    %151 = vmatprep.subr.mxu0 0.0
    %152 = vmatpush1.msra.mxu0 %v131
    %153 = vmatprep.subr.mxu0 0.0
    %154 = vmatpush1.msra.mxu0 %v132
    %155 = vmatprep.subr.mxu0 0.0
    %156 = vmatpush1.msra.mxu0 %v133
    %157 = vmatprep.subr.mxu0 0.0
    %158 = vmatpush1.msra.mxu0 %v134
    %159 = vmatprep.subr.mxu0 0.0
    %160 = vmatpush1.msra.mxu0 %v135
    %161 = vmatprep.subr.mxu0 0.0
    %162 = vmatpush1.msra.mxu0 %v136
    %163 = vmatprep.subr.mxu0 0.0
    %164 = vmatpush1.msra.mxu0 0.0
    %165 = vmatprep.subr.mxu0 0.0
    %166 = vmatpush1.msra.mxu0 0.0
    %167 = vmatprep.subr.mxu0 0.0
    %168 = vmatpush1.msra.mxu0 0.0
    %169 = vmatprep.subr.mxu0 0.0
    %170 = vmatpush1.msra.mxu0 0.0
    %171 = vmatprep.subr.mxu0 0.0
    %172 = vmatpush1.msra.mxu0 0.0
    %173 = vmatprep.subr.mxu0 0.0
    %174 = vmatpush1.msra.mxu0 0.0
    %175 = vmatprep.subr.mxu0 0.0
    %176 = vmatpush1.msra.mxu0 0.0
    %177 = vmatprep.subr.mxu0 0.0
    %178 = vmatpush1.msra.mxu0 0.0
    %179 = vmatprep.subr.mxu0 0.0
    %180 = vmatpush1.msra.mxu0 0.0
    %181 = vmatprep.subr.mxu0 0.0
    %182 = vmatpush1.msra.mxu0 0.0
    %183 = vmatprep.subr.mxu0 0.0
    %184 = vmatpush1.msra.mxu0 0.0
    %185 = vmatprep.subr.mxu0 0.0
    %186 = vmatpush1.msra.mxu0 0.0
    %187 = vmatprep.subr.mxu0 0.0
    %188 = vmatpush1.msra.mxu0 0.0
    %189 = vmatprep.subr.mxu0 0.0
    %190 = vmatpush1.msra.mxu0 0.0
    %191 = vmatprep.subr.mxu0 0.0
    %192 = vmatpush1.msra.mxu0 0.0
    %193 = vmatprep.subr.mxu0 0.0
    %194 = vmatpush1.msra.mxu0 0.0
    %195 = vmatprep.subr.mxu0 0.0
    %196 = vmatpush1.msra.mxu0 0.0
    %197 = vmatprep.subr.mxu0 0.0
    %198 = vmatpush1.msra.mxu0 0.0
    %199 = vmatprep.subr.mxu0 0.0
    %200 = vmatpush1.msra.mxu0 0.0
    %201 = vmatprep.subr.mxu0 0.0
    %202 = vmatpush1.msra.mxu0 0.0
    %203 = vmatprep.subr.mxu0 0.0
    %204 = vmatpush1.msra.mxu0 0.0
    %205 = vmatprep.subr.mxu0 0.0
    %206 = vmatpush1.msra.mxu0 0.0
    %207 = vmatprep.subr.mxu0 0.0
    %208 = vmatpush1.msra.mxu0 0.0
    %209 = vmatprep.subr.mxu0 0.0
    %210 = vmatpush1.msra.mxu0 0.0
    %211 = vmatprep.mubr.f32.mxu0 0.0
    %212 = vmatmul.mubr.f32.gmra.mrb[0].mxu0 %v145
    %v213 = vpop.f32.mrb[0].mxu0
    %v214 = vadd.f32 %v142, %v213
    %v215 = vpop.f32.mrb[0].mxu0
    %216 = vdwg.mxu0
    %v217 = vmax.f32 %v214, 0.0
    %vm218 = vcmask 254976
    %219 = vst.msk [vmem:[#allocation4] sm:$0x3] %vm218, %v217
    %v220 = vld [vmem:[%s5] sm:$0x3]
    %v221 = vld [vmem:[%s6] sm:$0xff]
    %v222 = vld [vmem:[%s6 + $0x8] sm:$0xff]
    %v223 = vld [vmem:[%s6 + $0x10] sm:$0xff]
    %v224 = vld [vmem:[%s6 + $0x18] sm:$0xff]
    %v225 = vld [vmem:[%s6 + $0x20] sm:$0xff]
    %v226 = vld [vmem:[%s6 + $0x28] sm:$0xff]
    %v227 = vld [vmem:[%s6 + $0x30] sm:$0xff]
    %v228 = vld [vmem:[%s6 + $0x38] sm:$0xff]
    %v229 = vld [vmem:[%s7] sm:$0x1]
    %v231 = vlaneseq
    %v232 = vshrl.u32 %v231, 7
    %v233 = vsub.s32 0, %v232
    %v234 = vrot.slane %v229, %v233
    %v237 = vsel %vm44, %v220, 0
    %239 = vmatprep.subr.mxu0 0.0
    %240 = vmatpush1.msra.mxu0 %v221
    %241 = vmatprep.subr.mxu0 0.0
    %242 = vmatpush1.msra.mxu0 %v222
    %243 = vmatprep.subr.mxu0 0.0
    %244 = vmatpush1.msra.mxu0 %v223
    %245 = vmatprep.subr.mxu0 0.0
    %246 = vmatpush1.msra.mxu0 %v224
    %247 = vmatprep.subr.mxu0 0.0
    %248 = vmatpush1.msra.mxu0 %v225
    %249 = vmatprep.subr.mxu0 0.0
    %250 = vmatpush1.msra.mxu0 %v226
    %251 = vmatprep.subr.mxu0 0.0
    %252 = vmatpush1.msra.mxu0 %v227
    %253 = vmatprep.subr.mxu0 0.0
    %254 = vmatpush1.msra.mxu0 %v228
    %255 = vmatprep.subr.mxu0 0.0
    %256 = vmatpush1.msra.mxu0 0.0
    %257 = vmatprep.subr.mxu0 0.0
    %258 = vmatpush1.msra.mxu0 0.0
    %259 = vmatprep.subr.mxu0 0.0
    %260 = vmatpush1.msra.mxu0 0.0
    %261 = vmatprep.subr.mxu0 0.0
    %262 = vmatpush1.msra.mxu0 0.0
    %263 = vmatprep.subr.mxu0 0.0
    %264 = vmatpush1.msra.mxu0 0.0
    %265 = vmatprep.subr.mxu0 0.0
    %266 = vmatpush1.msra.mxu0 0.0
    %267 = vmatprep.subr.mxu0 0.0
    %268 = vmatpush1.msra.mxu0 0.0
    %269 = vmatprep.subr.mxu0 0.0
    %270 = vmatpush1.msra.mxu0 0.0
    %271 = vmatprep.subr.mxu0 0.0
    %272 = vmatpush1.msra.mxu0 0.0
    %273 = vmatprep.subr.mxu0 0.0
    %274 = vmatpush1.msra.mxu0 0.0
    %275 = vmatprep.subr.mxu0 0.0
    %276 = vmatpush1.msra.mxu0 0.0
    %277 = vmatprep.subr.mxu0 0.0
    %278 = vmatpush1.msra.mxu0 0.0
    %279 = vmatprep.subr.mxu0 0.0
    %280 = vmatpush1.msra.mxu0 0.0
    %281 = vmatprep.subr.mxu0 0.0
    %282 = vmatpush1.msra.mxu0 0.0
    %283 = vmatprep.subr.mxu0 0.0
    %284 = vmatpush1.msra.mxu0 0.0
    %285 = vmatprep.subr.mxu0 0.0
    %286 = vmatpush1.msra.mxu0 0.0
    %287 = vmatprep.subr.mxu0 0.0
    %288 = vmatpush1.msra.mxu0 0.0
    %289 = vmatprep.subr.mxu0 0.0
    %290 = vmatpush1.msra.mxu0 0.0
    %291 = vmatprep.subr.mxu0 0.0
    %292 = vmatpush1.msra.mxu0 0.0
    %293 = vmatprep.subr.mxu0 0.0
    %294 = vmatpush1.msra.mxu0 0.0
    %295 = vmatprep.subr.mxu0 0.0
    %296 = vmatpush1.msra.mxu0 0.0
    %297 = vmatprep.subr.mxu0 0.0
    %298 = vmatpush1.msra.mxu0 0.0
    %299 = vmatprep.subr.mxu0 0.0
    %300 = vmatpush1.msra.mxu0 0.0
    %301 = vmatprep.subr.mxu0 0.0
    %302 = vmatpush1.msra.mxu0 0.0
    %303 = vmatprep.mubr.f32.mxu0 0.0
    %304 = vmatmul.mubr.f32.gmra.mrb[0].mxu0 %v237
    %v305 = vpop.f32.mrb[0].mxu0
    %v306 = vadd.f32 %v234, %v305
    %v307 = vpop.f32.mrb[0].mxu0
    %308 = vdwg.mxu0
    %v309 = vmax.f32 %v306, 0.0
    %310 = vst.msk [vmem:[#allocation6] sm:$0x3] %vm218, %v309
    // Predicated region
    $region34: #{encoder_forward.5} parent=1 // pred_check
      _
    $region35: #{encoder_forward.5} parent=1 // pred_check_branch
      %312 = sbr.rel (0) target = $region37
    $region36: #{encoder_forward.5} parent=1 // pred_region
      %s314 = ssub.s32 256, 256
      %315 = vsyncadd [#allocation3], %s314
      %s316 = sshll.u32 [#allocation2], 4
      %s317 = int_to_ptr.vmem [resolvable:$true] %s316
      %322 = dma.vmem_to_hbm [thread:$0]  %s317, 256, %s8, [#allocation3], 128, 128, 8
    $region37: #{encoder_forward.5} parent=1 // pred_fallthru
      _
    // Predicated region
    $region38: #{encoder_forward.5} parent=1 // pred_check
      _
    $region39: #{encoder_forward.5} parent=1 // pred_check_branch
      %324 = sbr.rel (0) target = $region41
    $region40: #{encoder_forward.5} parent=1 // pred_region
      %s326 = ssub.s32 32, 32
      %327 = vsyncadd [#allocation5], %s326
      %s329 = sshll.u32 [#allocation4], 4
      %s330 = int_to_ptr.vmem [resolvable:$true] %s329
      %332 = dma.vmem_to_hbm [thread:$0]  %s330, 32, %s9, [#allocation5]
    $region41: #{encoder_forward.5} parent=1 // pred_fallthru
      _
    // Predicated region
    $region42: #{encoder_forward.5} parent=1 // pred_check
      _
    $region43: #{encoder_forward.5} parent=1 // pred_check_branch
      %334 = sbr.rel (0) target = $region45
    $region44: #{encoder_forward.5} parent=1 // pred_region
      %s336 = ssub.s32 32, 32
      %337 = vsyncadd [#allocation5], %s336
      %s339 = sshll.u32 [#allocation6], 4
      %s340 = int_to_ptr.vmem [resolvable:$true] %s339
      %342 = dma.vmem_to_hbm [thread:$0]  %s340, 32, %s10, [#allocation5]
    $region45: #{encoder_forward.5} parent=1 // pred_fallthru
      _
    // Predicated region
    $region46: #{encoder_forward.5} parent=1 // pred_check
      _
    $region47: #{encoder_forward.5} parent=1 // pred_check_branch
      %344 = sbr.rel (0) target = $region49
    $region48: #{encoder_forward.5} parent=1 // pred_region
      %345 = dma.done [#allocation3], 256
    $region49: #{encoder_forward.5} parent=1 // pred_fallthru
      _
    // Predicated region
    $region50: #{encoder_forward.5} parent=1 // pred_check
      _
    $region51: #{encoder_forward.5} parent=1 // pred_check_branch
      %347 = sbr.rel (0) target = $region53
    $region52: #{encoder_forward.5} parent=1 // pred_region
      %348 = dma.done [#allocation5], 32
    $region53: #{encoder_forward.5} parent=1 // pred_fallthru
      _
    // Predicated region
    $region54: #{encoder_forward.5} parent=1 // pred_check
      _
    $region55: #{encoder_forward.5} parent=1 // pred_check_branch
      %350 = sbr.rel (0) target = $region57
    $region56: #{encoder_forward.5} parent=1 // pred_region
      %351 = dma.done [#allocation5], 32
    $region57: #{encoder_forward.5} parent=1 // pred_fallthru
      _
    %352 = vsyncpa [#allocation3], 1
    %353 = vsyncpa [#allocation5], 1

// kernel: encoder_forward.4
$region0: #{encoder_forward.4}
  #allocation0 [shape = 'u32[]', space=smem, size = 0x4, offset = 0x4, fixed_abs, tag = 'smem constant byte address 0x4 - core index']
  #allocation1 [shape = 'u32[144,128]{1,0:T(1,128)}', space=vmem, size = 0x12000, scoped, tag = 'internal scratch']
  %s0 = inlined_call_operand.vmem [shape: f32[8,2,512], index: 0, kind: input, shape index: {}]
  %s1 = inlined_call_operand.vmem [shape: f32[128,512], index: 1, kind: input, shape index: {}]
  %s2 = inlined_call_operand.vmem [shape: f32[8,2,128], index: 2, kind: output, shape index: {0}]
  %s3 = inlined_call_operand.vmem [shape: f32[2,128], index: 3, kind: output, shape index: {1}]
  %s4 = inlined_call_operand.vmem [shape: f32[2,128], index: 4, kind: output, shape index: {2}]
  %5 = xla_tuple %s2, %s3, %s4
  %s6 = sld [smem:[#allocation0]]
  $region34: #{encoder_forward.4} parent=0
    _
  %s8 = ssub.s32 1, %s6
  %s9 = scalar_select 0, %s8, %s6
  // Predicated region
  $region2: #{encoder_forward.4} parent=0 // pred_check
    _
  $region3: #{encoder_forward.4} parent=0 // pred_check_branch
    %11 = sbr.rel (0) target = $region5
  $region4: #{encoder_forward.4} parent=0 // pred_region
    _
  $region5: #{encoder_forward.4} parent=0 // pred_fallthru
    _
  // Predicated region
  $region6: #{encoder_forward.4} parent=0 // pred_check
    _
  $region7: #{encoder_forward.4} parent=0 // pred_check_branch
    %13 = sbr.rel (0) target = $region9
  $region8: #{encoder_forward.4} parent=0 // pred_region
    _
  $region9: #{encoder_forward.4} parent=0 // pred_fallthru
    _
  %v14 = vld [vmem:[%s1] sm:$0xff]
  %v15 = vld [vmem:[%s1 + $0x8] sm:$0xff]
  %v16 = vld [vmem:[%s1 + $0x10] sm:$0xff]
  %v17 = vld [vmem:[%s1 + $0x18] sm:$0xff]
  %v18 = vld [vmem:[%s1 + $0x20] sm:$0xff]
  %v19 = vld [vmem:[%s1 + $0x28] sm:$0xff]
  %v20 = vld [vmem:[%s1 + $0x30] sm:$0xff]
  %v21 = vld [vmem:[%s1 + $0x38] sm:$0xff]
  %v22 = vld [vmem:[%s1 + $0x40] sm:$0xff]
  %v23 = vld [vmem:[%s1 + $0x48] sm:$0xff]
  %v24 = vld [vmem:[%s1 + $0x50] sm:$0xff]
  %v25 = vld [vmem:[%s1 + $0x58] sm:$0xff]
  %v26 = vld [vmem:[%s1 + $0x60] sm:$0xff]
  %v27 = vld [vmem:[%s1 + $0x68] sm:$0xff]
  %v28 = vld [vmem:[%s1 + $0x70] sm:$0xff]
  %v29 = vld [vmem:[%s1 + $0x78] sm:$0xff]
  %v30 = vld [vmem:[%s1 + $0x80] sm:$0xff]
  %v31 = vld [vmem:[%s1 + $0x88] sm:$0xff]
  %v32 = vld [vmem:[%s1 + $0x90] sm:$0xff]
  %v33 = vld [vmem:[%s1 + $0x98] sm:$0xff]
  %v34 = vld [vmem:[%s1 + $0xa0] sm:$0xff]
  %v35 = vld [vmem:[%s1 + $0xa8] sm:$0xff]
  %v36 = vld [vmem:[%s1 + $0xb0] sm:$0xff]
  %v37 = vld [vmem:[%s1 + $0xb8] sm:$0xff]
  %v38 = vld [vmem:[%s1 + $0xc0] sm:$0xff]
  %v39 = vld [vmem:[%s1 + $0xc8] sm:$0xff]
  %v40 = vld [vmem:[%s1 + $0xd0] sm:$0xff]
  %v41 = vld [vmem:[%s1 + $0xd8] sm:$0xff]
  %v42 = vld [vmem:[%s1 + $0xe0] sm:$0xff]
  %v43 = vld [vmem:[%s1 + $0xe8] sm:$0xff]
  %v44 = vld [vmem:[%s1 + $0xf0] sm:$0xff]
  %v45 = vld [vmem:[%s1 + $0xf8] sm:$0xff]
  %v46 = vld [vmem:[%s1 + $0x100] sm:$0xff]
  %v47 = vld [vmem:[%s1 + $0x108] sm:$0xff]
  %v48 = vld [vmem:[%s1 + $0x110] sm:$0xff]
  %v49 = vld [vmem:[%s1 + $0x118] sm:$0xff]
  %v50 = vld [vmem:[%s1 + $0x120] sm:$0xff]
  %v51 = vld [vmem:[%s1 + $0x128] sm:$0xff]
  %v52 = vld [vmem:[%s1 + $0x130] sm:$0xff]
  %v53 = vld [vmem:[%s1 + $0x138] sm:$0xff]
  %v54 = vld [vmem:[%s1 + $0x140] sm:$0xff]
  %v55 = vld [vmem:[%s1 + $0x148] sm:$0xff]
  %v56 = vld [vmem:[%s1 + $0x150] sm:$0xff]
  %v57 = vld [vmem:[%s1 + $0x158] sm:$0xff]
  %v58 = vld [vmem:[%s1 + $0x160] sm:$0xff]
  %v59 = vld [vmem:[%s1 + $0x168] sm:$0xff]
  %v60 = vld [vmem:[%s1 + $0x170] sm:$0xff]
  %v61 = vld [vmem:[%s1 + $0x178] sm:$0xff]
  %v62 = vld [vmem:[%s1 + $0x180] sm:$0xff]
  %v63 = vld [vmem:[%s1 + $0x188] sm:$0xff]
  %v64 = vld [vmem:[%s1 + $0x190] sm:$0xff]
  %v65 = vld [vmem:[%s1 + $0x198] sm:$0xff]
  %v66 = vld [vmem:[%s1 + $0x1a0] sm:$0xff]
  %v67 = vld [vmem:[%s1 + $0x1a8] sm:$0xff]
  %v68 = vld [vmem:[%s1 + $0x1b0] sm:$0xff]
  %v69 = vld [vmem:[%s1 + $0x1b8] sm:$0xff]
  %v70 = vld [vmem:[%s1 + $0x1c0] sm:$0xff]
  %v71 = vld [vmem:[%s1 + $0x1c8] sm:$0xff]
  %v72 = vld [vmem:[%s1 + $0x1d0] sm:$0xff]
  %v73 = vld [vmem:[%s1 + $0x1d8] sm:$0xff]
  %v74 = vld [vmem:[%s1 + $0x1e0] sm:$0xff]
  %v75 = vld [vmem:[%s1 + $0x1e8] sm:$0xff]
  %v76 = vld [vmem:[%s1 + $0x1f0] sm:$0xff]
  %v77 = vld [vmem:[%s1 + $0x1f8] sm:$0xff]
  %v78 = vld [vmem:[%s0] sm:$0xff]
  %79 = vmatprep.subr.mxu0 %v15
  %80 = vmatpush1.msra.mxu0 %v14
  %81 = vmatprep.subr.mxu0 %v19
  %82 = vmatpush1.msra.mxu0 %v18
  %83 = vmatprep.subr.mxu0 %v23
  %84 = vmatpush1.msra.mxu0 %v22
  %85 = vmatprep.subr.mxu0 %v27
  %86 = vmatpush1.msra.mxu0 %v26
  %87 = vmatprep.subr.mxu0 %v31
  %88 = vmatpush1.msra.mxu0 %v30
  %89 = vmatprep.subr.mxu0 %v35
  %90 = vmatpush1.msra.mxu0 %v34
  %91 = vmatprep.subr.mxu0 %v39
  %92 = vmatpush1.msra.mxu0 %v38
  %93 = vmatprep.subr.mxu0 %v43
  %94 = vmatpush1.msra.mxu0 %v42
  %95 = vmatprep.subr.mxu0 %v47
  %96 = vmatpush1.msra.mxu0 %v46
  %97 = vmatprep.subr.mxu0 %v51
  %98 = vmatpush1.msra.mxu0 %v50
  %99 = vmatprep.subr.mxu0 %v55
  %100 = vmatpush1.msra.mxu0 %v54
  %101 = vmatprep.subr.mxu0 %v59
  %102 = vmatpush1.msra.mxu0 %v58
  %103 = vmatprep.subr.mxu0 %v63
  %104 = vmatpush1.msra.mxu0 %v62
  %105 = vmatprep.subr.mxu0 %v67
  %106 = vmatpush1.msra.mxu0 %v66
  %107 = vmatprep.subr.mxu0 %v71
  %108 = vmatpush1.msra.mxu0 %v70
  %109 = vmatprep.subr.mxu0 %v75
  %110 = vmatpush1.msra.mxu0 %v74
  %111 = vmatprep.subr.mxu0 0.0
  %112 = vmatpush1.msra.mxu0 0.0
  %113 = vmatprep.subr.mxu0 0.0
  %114 = vmatpush1.msra.mxu0 0.0
  %115 = vmatprep.subr.mxu0 0.0
  %116 = vmatpush1.msra.mxu0 0.0
  %117 = vmatprep.subr.mxu0 0.0
  %118 = vmatpush1.msra.mxu0 0.0
  %119 = vmatprep.subr.mxu0 0.0
  %120 = vmatpush1.msra.mxu0 0.0
  %121 = vmatprep.subr.mxu0 0.0
  %122 = vmatpush1.msra.mxu0 0.0
  %123 = vmatprep.subr.mxu0 0.0
  %124 = vmatpush1.msra.mxu0 0.0
  %125 = vmatprep.subr.mxu0 0.0
  %126 = vmatpush1.msra.mxu0 0.0
  %127 = vmatprep.subr.mxu0 0.0
  %128 = vmatpush1.msra.mxu0 0.0
  %129 = vmatprep.subr.mxu0 0.0
  %130 = vmatpush1.msra.mxu0 0.0
  %131 = vmatprep.subr.mxu0 0.0
  %132 = vmatpush1.msra.mxu0 0.0
  %133 = vmatprep.subr.mxu0 0.0
  %134 = vmatpush1.msra.mxu0 0.0
  %135 = vmatprep.subr.mxu0 0.0
  %136 = vmatpush1.msra.mxu0 0.0
  %137 = vmatprep.subr.mxu0 0.0
  %138 = vmatpush1.msra.mxu0 0.0
  %139 = vmatprep.subr.mxu0 0.0
  %140 = vmatpush1.msra.mxu0 0.0
  %141 = vmatprep.subr.mxu0 0.0
  %142 = vmatpush1.msra.mxu0 0.0
  %143 = vmatprep.mubr.f32.mxu0 0.0
  %144 = vmatmul.mubr.f32.gmra.mrb[0].mxu0 0.0
  %v145 = vpop.f32.mrb[0].mxu0
  %v146 = vadd.f32 0.0, %v145
  %v147 = vpop.f32.mrb[0].mxu0
  %v148 = vadd.f32 0.0, %v147
  %149 = vdwg.mxu0
  %150 = vmatprep.subr.mxu0 %v17
  %151 = vmatpush1.msra.mxu0 %v16
  %152 = vmatprep.subr.mxu0 %v21
  %153 = vmatpush1.msra.mxu0 %v20
  %154 = vmatprep.subr.mxu0 %v25
  %155 = vmatpush1.msra.mxu0 %v24
  %156 = vmatprep.subr.mxu0 %v29
  %157 = vmatpush1.msra.mxu0 %v28
  %158 = vmatprep.subr.mxu0 %v33
  %159 = vmatpush1.msra.mxu0 %v32
  %160 = vmatprep.subr.mxu0 %v37
  %161 = vmatpush1.msra.mxu0 %v36
  %162 = vmatprep.subr.mxu0 %v41
  %163 = vmatpush1.msra.mxu0 %v40
  %164 = vmatprep.subr.mxu0 %v45
  %165 = vmatpush1.msra.mxu0 %v44
  %166 = vmatprep.subr.mxu0 %v49
  %167 = vmatpush1.msra.mxu0 %v48
  %168 = vmatprep.subr.mxu0 %v53
  %169 = vmatpush1.msra.mxu0 %v52
  %170 = vmatprep.subr.mxu0 %v57
  %171 = vmatpush1.msra.mxu0 %v56
  %172 = vmatprep.subr.mxu0 %v61
  %173 = vmatpush1.msra.mxu0 %v60
  %174 = vmatprep.subr.mxu0 %v65
  %175 = vmatpush1.msra.mxu0 %v64
  %176 = vmatprep.subr.mxu0 %v69
  %177 = vmatpush1.msra.mxu0 %v68
  %178 = vmatprep.subr.mxu0 %v73
  %179 = vmatpush1.msra.mxu0 %v72
  %180 = vmatprep.subr.mxu0 %v77
  %181 = vmatpush1.msra.mxu0 %v76
  %182 = vmatprep.subr.mxu0 0.0
  %183 = vmatpush1.msra.mxu0 0.0
  %184 = vmatprep.subr.mxu0 0.0
  %185 = vmatpush1.msra.mxu0 0.0
  %186 = vmatprep.subr.mxu0 0.0
  %187 = vmatpush1.msra.mxu0 0.0
  %188 = vmatprep.subr.mxu0 0.0
  %189 = vmatpush1.msra.mxu0 0.0
  %190 = vmatprep.subr.mxu0 0.0
  %191 = vmatpush1.msra.mxu0 0.0
  %192 = vmatprep.subr.mxu0 0.0
  %193 = vmatpush1.msra.mxu0 0.0
  %194 = vmatprep.subr.mxu0 0.0
  %195 = vmatpush1.msra.mxu0 0.0
  %196 = vmatprep.subr.mxu0 0.0
  %197 = vmatpush1.msra.mxu0 0.0
  %198 = vmatprep.subr.mxu0 0.0
  %199 = vmatpush1.msra.mxu0 0.0
  %200 = vmatprep.subr.mxu0 0.0
  %201 = vmatpush1.msra.mxu0 0.0
  %202 = vmatprep.subr.mxu0 0.0
  %203 = vmatpush1.msra.mxu0 0.0
  %204 = vmatprep.subr.mxu0 0.0
  %205 = vmatpush1.msra.mxu0 0.0
  %206 = vmatprep.subr.mxu0 0.0
  %207 = vmatpush1.msra.mxu0 0.0
  %208 = vmatprep.subr.mxu0 0.0
  %209 = vmatpush1.msra.mxu0 0.0
  %210 = vmatprep.subr.mxu0 0.0
  %211 = vmatpush1.msra.mxu0 0.0
  %212 = vmatprep.subr.mxu0 0.0
  %213 = vmatpush1.msra.mxu0 0.0
  %214 = vmatprep.mubr.f32.mxu0 0.0
  %215 = vmatmul.mubr.f32.gmra.mrb[0].mxu0 0.0
  %v216 = vpop.f32.mrb[0].mxu0
  %v217 = vadd.f32 0.0, %v216
  %v218 = vpop.f32.mrb[0].mxu0
  %v219 = vadd.f32 0.0, %v218
  %220 = vdwg.mxu0
  %v225 = vcombine.low %v146, %v148
  %v226 = vcombine.low %v217, %v219
  %v228 = vunpack.c.l.s4 1983009808
  %v229 = vunpack.c.0.s8 %v228
  %v230 = vlaneseq
  %v231 = vshrl.u32 %v230, 7
  %v232 = vsub.s32 %v229, %v231
  %v233 = vrot.slane %v225, %v232
  %v235 = vunpack.c.l.s4 1983009808
  %v236 = vunpack.c.0.s8 %v235
  %v237 = vlaneseq
  %v238 = vshrl.u32 %v237, 7
  %v239 = vsub.s32 %v236, %v238
  %v240 = vrot.slane %v226, %v239
  %v241 = vcombine.low %v233, %v240
  %v243 = vadd.f32 %v78, %v241
  %v244 = vxor.u32 %v243, 2147483648
  %v245 = vmul.f32 %v244, 1.442695
  %v246 = vpow.pop %v245
  %v247 = vadd.f32 %v246, 1.0
  %v248 = vrcp.pop %v247
  %v249 = vmul.f32 1.0, %v248
  %v251 = vrot.slane %v243, 2
  %v253 = vxor.u32 %v251, 2147483648
  %v254 = vmul.f32 %v253, 1.442695
  %v255 = vpow.pop %v254
  %v256 = vadd.f32 %v255, 1.0
  %v257 = vrcp.pop %v256
  %v258 = vmul.f32 1.0, %v257
  %v259 = vrot.slane %v243, 4
  %v261 = vtanh.pop %v259
  %v262 = vrot.slane %v243, 6
  %v264 = vxor.u32 %v262, 2147483648
  %v265 = vmul.f32 %v264, 1.442695
  %v266 = vpow.pop %v265
  %v267 = vadd.f32 %v266, 1.0
  %v268 = vrcp.pop %v267
  %v269 = vmul.f32 1.0, %v268
  %v270 = vmul.f32 %v258, 0.0
  %v271 = vmul.f32 %v249, %v261
  %v272 = vadd.f32 %v270, %v271
  %v273 = vtanh.pop %v272
  %v274 = vmul.f32 %v269, %v273
  %275 = vst [vmem:[%s2] sm:$0x3] %v274
  %s276 = scalar_lea.vmem %s0, 8
  %v277 = vld [vmem:[%s276] sm:$0xff]
  %278 = vmatprep.subr.mxu0 %v15
  %279 = vmatpush1.msra.mxu0 %v14
  %280 = vmatprep.subr.mxu0 %v19
  %281 = vmatpush1.msra.mxu0 %v18
  %282 = vmatprep.subr.mxu0 %v23
  %283 = vmatpush1.msra.mxu0 %v22
  %284 = vmatprep.subr.mxu0 %v27
  %285 = vmatpush1.msra.mxu0 %v26
  %286 = vmatprep.subr.mxu0 %v31
  %287 = vmatpush1.msra.mxu0 %v30
  %288 = vmatprep.subr.mxu0 %v35
  %289 = vmatpush1.msra.mxu0 %v34
  %290 = vmatprep.subr.mxu0 %v39
  %291 = vmatpush1.msra.mxu0 %v38
  %292 = vmatprep.subr.mxu0 %v43
  %293 = vmatpush1.msra.mxu0 %v42
  %294 = vmatprep.subr.mxu0 %v47
  %295 = vmatpush1.msra.mxu0 %v46
  %296 = vmatprep.subr.mxu0 %v51
  %297 = vmatpush1.msra.mxu0 %v50
  %298 = vmatprep.subr.mxu0 %v55
  %299 = vmatpush1.msra.mxu0 %v54
  %300 = vmatprep.subr.mxu0 %v59
  %301 = vmatpush1.msra.mxu0 %v58
  %302 = vmatprep.subr.mxu0 %v63
  %303 = vmatpush1.msra.mxu0 %v62
  %304 = vmatprep.subr.mxu0 %v67
  %305 = vmatpush1.msra.mxu0 %v66
  %306 = vmatprep.subr.mxu0 %v71
  %307 = vmatpush1.msra.mxu0 %v70
  %308 = vmatprep.subr.mxu0 %v75
  %309 = vmatpush1.msra.mxu0 %v74
  %310 = vmatprep.subr.mxu0 0.0
  %311 = vmatpush1.msra.mxu0 0.0
  %312 = vmatprep.subr.mxu0 0.0
  %313 = vmatpush1.msra.mxu0 0.0
  %314 = vmatprep.subr.mxu0 0.0
  %315 = vmatpush1.msra.mxu0 0.0
  %316 = vmatprep.subr.mxu0 0.0
  %317 = vmatpush1.msra.mxu0 0.0
  %318 = vmatprep.subr.mxu0 0.0
  %319 = vmatpush1.msra.mxu0 0.0
  %320 = vmatprep.subr.mxu0 0.0
  %321 = vmatpush1.msra.mxu0 0.0
  %322 = vmatprep.subr.mxu0 0.0
  %323 = vmatpush1.msra.mxu0 0.0
  %324 = vmatprep.subr.mxu0 0.0
  %325 = vmatpush1.msra.mxu0 0.0
  %326 = vmatprep.subr.mxu0 0.0
  %327 = vmatpush1.msra.mxu0 0.0
  %328 = vmatprep.subr.mxu0 0.0
  %329 = vmatpush1.msra.mxu0 0.0
  %330 = vmatprep.subr.mxu0 0.0
  %331 = vmatpush1.msra.mxu0 0.0
  %332 = vmatprep.subr.mxu0 0.0
  %333 = vmatpush1.msra.mxu0 0.0
  %334 = vmatprep.subr.mxu0 0.0
  %335 = vmatpush1.msra.mxu0 0.0
  %336 = vmatprep.subr.mxu0 0.0
  %337 = vmatpush1.msra.mxu0 0.0
  %338 = vmatprep.subr.mxu0 0.0
  %339 = vmatpush1.msra.mxu0 0.0
  %340 = vmatprep.subr.mxu0 0.0
  %341 = vmatpush1.msra.mxu0 0.0
  %342 = vmatprep.mubr.f32.mxu0 0.0
  %343 = vmatmul.mubr.f32.gmra.mrb[0].mxu0 %v274
  %v344 = vpop.f32.mrb[0].mxu0
  %v345 = vadd.f32 0.0, %v344
  %v346 = vpop.f32.mrb[0].mxu0
  %v347 = vadd.f32 0.0, %v346
  %348 = vdwg.mxu0
  %349 = vmatprep.subr.mxu0 %v17
  %350 = vmatpush1.msra.mxu0 %v16
  %351 = vmatprep.subr.mxu0 %v21
  %352 = vmatpush1.msra.mxu0 %v20
  %353 = vmatprep.subr.mxu0 %v25
  %354 = vmatpush1.msra.mxu0 %v24
  %355 = vmatprep.subr.mxu0 %v29
  %356 = vmatpush1.msra.mxu0 %v28
  %357 = vmatprep.subr.mxu0 %v33
  %358 = vmatpush1.msra.mxu0 %v32
  %359 = vmatprep.subr.mxu0 %v37
  %360 = vmatpush1.msra.mxu0 %v36
  %361 = vmatprep.subr.mxu0 %v41
  %362 = vmatpush1.msra.mxu0 %v40
  %363 = vmatprep.subr.mxu0 %v45
  %364 = vmatpush1.msra.mxu0 %v44
  %365 = vmatprep.subr.mxu0 %v49
  %366 = vmatpush1.msra.mxu0 %v48
  %367 = vmatprep.subr.mxu0 %v53
  %368 = vmatpush1.msra.mxu0 %v52
  %369 = vmatprep.subr.mxu0 %v57
  %370 = vmatpush1.msra.mxu0 %v56
  %371 = vmatprep.subr.mxu0 %v61
  %372 = vmatpush1.msra.mxu0 %v60
  %373 = vmatprep.subr.mxu0 %v65
  %374 = vmatpush1.msra.mxu0 %v64
  %375 = vmatprep.subr.mxu0 %v69
  %376 = vmatpush1.msra.mxu0 %v68
  %377 = vmatprep.subr.mxu0 %v73
  %378 = vmatpush1.msra.mxu0 %v72
  %379 = vmatprep.subr.mxu0 %v77
  %380 = vmatpush1.msra.mxu0 %v76
  %381 = vmatprep.subr.mxu0 0.0
  %382 = vmatpush1.msra.mxu0 0.0
  %383 = vmatprep.subr.mxu0 0.0
  %384 = vmatpush1.msra.mxu0 0.0
  %385 = vmatprep.subr.mxu0 0.0
  %386 = vmatpush1.msra.mxu0 0.0
  %387 = vmatprep.subr.mxu0 0.0
  %388 = vmatpush1.msra.mxu0 0.0
  %389 = vmatprep.subr.mxu0 0.0
  %390 = vmatpush1.msra.mxu0 0.0
  %391 = vmatprep.subr.mxu0 0.0
  %392 = vmatpush1.msra.mxu0 0.0
  %393 = vmatprep.subr.mxu0 0.0
  %394 = vmatpush1.msra.mxu0 0.0
  %395 = vmatprep.subr.mxu0 0.0
  %396 = vmatpush1.msra.mxu0 0.0
  %397 = vmatprep.subr.mxu0 0.0
  %398 = vmatpush1.msra.mxu0 0.0
  %399 = vmatprep.subr.mxu0 0.0
  %400 = vmatpush1.msra.mxu0 0.0
  %401 = vmatprep.subr.mxu0 0.0
  %402 = vmatpush1.msra.mxu0 0.0
  %403 = vmatprep.subr.mxu0 0.0
  %404 = vmatpush1.msra.mxu0 0.0
  %405 = vmatprep.subr.mxu0 0.0
  %406 = vmatpush1.msra.mxu0 0.0
  %407 = vmatprep.subr.mxu0 0.0
  %408 = vmatpush1.msra.mxu0 0.0
  %409 = vmatprep.subr.mxu0 0.0
  %410 = vmatpush1.msra.mxu0 0.0
  %411 = vmatprep.subr.mxu0 0.0
  %412 = vmatpush1.msra.mxu0 0.0
  %413 = vmatprep.mubr.f32.mxu0 0.0
  %414 = vmatmul.mubr.f32.gmra.mrb[0].mxu0 %v274
  %v415 = vpop.f32.mrb[0].mxu0
  %v416 = vadd.f32 0.0, %v415
  %v417 = vpop.f32.mrb[0].mxu0
  %v418 = vadd.f32 0.0, %v417
  %419 = vdwg.mxu0
  %v424 = vcombine.low %v345, %v347
  %v425 = vcombine.low %v416, %v418
  %v427 = vunpack.c.l.s4 1983009808
  %v428 = vunpack.c.0.s8 %v427
  %v429 = vlaneseq
  %v430 = vshrl.u32 %v429, 7
  %v431 = vsub.s32 %v428, %v430
  %v432 = vrot.slane %v424, %v431
  %v434 = vunpack.c.l.s4 1983009808
  %v435 = vunpack.c.0.s8 %v434
  %v436 = vlaneseq
  %v437 = vshrl.u32 %v436, 7
  %v438 = vsub.s32 %v435, %v437
  %v439 = vrot.slane %v425, %v438
  %v440 = vcombine.low %v432, %v439
  %v442 = vadd.f32 %v277, %v440
  %v443 = vxor.u32 %v442, 2147483648
  %v444 = vmul.f32 %v443, 1.442695
  %v445 = vpow.pop %v444
  %v446 = vadd.f32 %v445, 1.0
  %v447 = vrcp.pop %v446
  %v448 = vmul.f32 1.0, %v447
  %v450 = vrot.slane %v442, 2
  %v452 = vxor.u32 %v450, 2147483648
  %v453 = vmul.f32 %v452, 1.442695
  %v454 = vpow.pop %v453
  %v455 = vadd.f32 %v454, 1.0
  %v456 = vrcp.pop %v455
  %v457 = vmul.f32 1.0, %v456
  %v458 = vrot.slane %v442, 4
  %v460 = vtanh.pop %v458
  %v461 = vrot.slane %v442, 6
  %v463 = vxor.u32 %v461, 2147483648
  %v464 = vmul.f32 %v463, 1.442695
  %v465 = vpow.pop %v464
  %v466 = vadd.f32 %v465, 1.0
  %v467 = vrcp.pop %v466
  %v468 = vmul.f32 1.0, %v467
  %v469 = vmul.f32 %v457, %v272
  %v470 = vmul.f32 %v448, %v460
  %v471 = vadd.f32 %v469, %v470
  %v472 = vtanh.pop %v471
  %v473 = vmul.f32 %v468, %v472
  %s474 = scalar_lea.vmem %s2, 2
  %475 = vst [vmem:[%s474] sm:$0x3] %v473
  %s476 = scalar_lea.vmem %s0, 16
  %v477 = vld [vmem:[%s476] sm:$0xff]
  %478 = vmatprep.subr.mxu0 %v15
  %479 = vmatpush1.msra.mxu0 %v14
  %480 = vmatprep.subr.mxu0 %v19
  %481 = vmatpush1.msra.mxu0 %v18
  %482 = vmatprep.subr.mxu0 %v23
  %483 = vmatpush1.msra.mxu0 %v22
  %484 = vmatprep.subr.mxu0 %v27
  %485 = vmatpush1.msra.mxu0 %v26
  %486 = vmatprep.subr.mxu0 %v31
  %487 = vmatpush1.msra.mxu0 %v30
  %488 = vmatprep.subr.mxu0 %v35
  %489 = vmatpush1.msra.mxu0 %v34
  %490 = vmatprep.subr.mxu0 %v39
  %491 = vmatpush1.msra.mxu0 %v38
  %492 = vmatprep.subr.mxu0 %v43
  %493 = vmatpush1.msra.mxu0 %v42
  %494 = vmatprep.subr.mxu0 %v47
  %495 = vmatpush1.msra.mxu0 %v46
  %496 = vmatprep.subr.mxu0 %v51
  %497 = vmatpush1.msra.mxu0 %v50
  %498 = vmatprep.subr.mxu0 %v55
  %499 = vmatpush1.msra.mxu0 %v54
  %500 = vmatprep.subr.mxu0 %v59
  %501 = vmatpush1.msra.mxu0 %v58
  %502 = vmatprep.subr.mxu0 %v63
  %503 = vmatpush1.msra.mxu0 %v62
  %504 = vmatprep.subr.mxu0 %v67
  %505 = vmatpush1.msra.mxu0 %v66
  %506 = vmatprep.subr.mxu0 %v71
  %507 = vmatpush1.msra.mxu0 %v70
  %508 = vmatprep.subr.mxu0 %v75
  %509 = vmatpush1.msra.mxu0 %v74
  %510 = vmatprep.subr.mxu0 0.0
  %511 = vmatpush1.msra.mxu0 0.0
  %512 = vmatprep.subr.mxu0 0.0
  %513 = vmatpush1.msra.mxu0 0.0
  %514 = vmatprep.subr.mxu0 0.0
  %515 = vmatpush1.msra.mxu0 0.0
  %516 = vmatprep.subr.mxu0 0.0
  %517 = vmatpush1.msra.mxu0 0.0
  %518 = vmatprep.subr.mxu0 0.0
  %519 = vmatpush1.msra.mxu0 0.0
  %520 = vmatprep.subr.mxu0 0.0
  %521 = vmatpush1.msra.mxu0 0.0
  %522 = vmatprep.subr.mxu0 0.0
  %523 = vmatpush1.msra.mxu0 0.0
  %524 = vmatprep.subr.mxu0 0.0
  %525 = vmatpush1.msra.mxu0 0.0
  %526 = vmatprep.subr.mxu0 0.0
  %527 = vmatpush1.msra.mxu0 0.0
  %528 = vmatprep.subr.mxu0 0.0
  %529 = vmatpush1.msra.mxu0 0.0
  %530 = vmatprep.subr.mxu0 0.0
  %531 = vmatpush1.msra.mxu0 0.0
  %532 = vmatprep.subr.mxu0 0.0
  %533 = vmatpush1.msra.mxu0 0.0
  %534 = vmatprep.subr.mxu0 0.0
  %535 = vmatpush1.msra.mxu0 0.0
  %536 = vmatprep.subr.mxu0 0.0
  %537 = vmatpush1.msra.mxu0 0.0
  %538 = vmatprep.subr.mxu0 0.0
  %539 = vmatpush1.msra.mxu0 0.0
  %540 = vmatprep.subr.mxu0 0.0
  %541 = vmatpush1.msra.mxu0 0.0
  %542 = vmatprep.mubr.f32.mxu0 0.0
  %543 = vmatmul.mubr.f32.gmra.mrb[0].mxu0 %v473
  %v544 = vpop.f32.mrb[0].mxu0
  %v545 = vadd.f32 0.0, %v544
  %v546 = vpop.f32.mrb[0].mxu0
  %v547 = vadd.f32 0.0, %v546
  %548 = vdwg.mxu0
  %549 = vmatprep.subr.mxu0 %v17
  %550 = vmatpush1.msra.mxu0 %v16
  %551 = vmatprep.subr.mxu0 %v21
  %552 = vmatpush1.msra.mxu0 %v20
  %553 = vmatprep.subr.mxu0 %v25
  %554 = vmatpush1.msra.mxu0 %v24
  %555 = vmatprep.subr.mxu0 %v29
  %556 = vmatpush1.msra.mxu0 %v28
  %557 = vmatprep.subr.mxu0 %v33
  %558 = vmatpush1.msra.mxu0 %v32
  %559 = vmatprep.subr.mxu0 %v37
  %560 = vmatpush1.msra.mxu0 %v36
  %561 = vmatprep.subr.mxu0 %v41
  %562 = vmatpush1.msra.mxu0 %v40
  %563 = vmatprep.subr.mxu0 %v45
  %564 = vmatpush1.msra.mxu0 %v44
  %565 = vmatprep.subr.mxu0 %v49
  %566 = vmatpush1.msra.mxu0 %v48
  %567 = vmatprep.subr.mxu0 %v53
  %568 = vmatpush1.msra.mxu0 %v52
  %569 = vmatprep.subr.mxu0 %v57
  %570 = vmatpush1.msra.mxu0 %v56
  %571 = vmatprep.subr.mxu0 %v61
  %572 = vmatpush1.msra.mxu0 %v60
  %573 = vmatprep.subr.mxu0 %v65
  %574 = vmatpush1.msra.mxu0 %v64
  %575 = vmatprep.subr.mxu0 %v69
  %576 = vmatpush1.msra.mxu0 %v68
  %577 = vmatprep.subr.mxu0 %v73
  %578 = vmatpush1.msra.mxu0 %v72
  %579 = vmatprep.subr.mxu0 %v77
  %580 = vmatpush1.msra.mxu0 %v76
  %581 = vmatprep.subr.mxu0 0.0
  %582 = vmatpush1.msra.mxu0 0.0
  %583 = vmatprep.subr.mxu0 0.0
  %584 = vmatpush1.msra.mxu0 0.0
  %585 = vmatprep.subr.mxu0 0.0
  %586 = vmatpush1.msra.mxu0 0.0
  %587 = vmatprep.subr.mxu0 0.0
  %588 = vmatpush1.msra.mxu0 0.0
  %589 = vmatprep.subr.mxu0 0.0
  %590 = vmatpush1.msra.mxu0 0.0
  %591 = vmatprep.subr.mxu0 0.0
  %592 = vmatpush1.msra.mxu0 0.0
  %593 = vmatprep.subr.mxu0 0.0
  %594 = vmatpush1.msra.mxu0 0.0
  %595 = vmatprep.subr.mxu0 0.0
  %596 = vmatpush1.msra.mxu0 0.0
  %597 = vmatprep.subr.mxu0 0.0
  %598 = vmatpush1.msra.mxu0 0.0
  %599 = vmatprep.subr.mxu0 0.0
  %600 = vmatpush1.msra.mxu0 0.0
  %601 = vmatprep.subr.mxu0 0.0
  %602 = vmatpush1.msra.mxu0 0.0
  %603 = vmatprep.subr.mxu0 0.0
  %604 = vmatpush1.msra.mxu0 0.0
  %605 = vmatprep.subr.mxu0 0.0
  %606 = vmatpush1.msra.mxu0 0.0
  %607 = vmatprep.subr.mxu0 0.0
  %608 = vmatpush1.msra.mxu0 0.0
  %609 = vmatprep.subr.mxu0 0.0
  %610 = vmatpush1.msra.mxu0 0.0
  %611 = vmatprep.subr.mxu0 0.0
  %612 = vmatpush1.msra.mxu0 0.0
  %613 = vmatprep.mubr.f32.mxu0 0.0
  %614 = vmatmul.mubr.f32.gmra.mrb[0].mxu0 %v473
  %v615 = vpop.f32.mrb[0].mxu0
  %v616 = vadd.f32 0.0, %v615
  %v617 = vpop.f32.mrb[0].mxu0
  %v618 = vadd.f32 0.0, %v617
  %619 = vdwg.mxu0
  %v624 = vcombine.low %v545, %v547
  %v625 = vcombine.low %v616, %v618
  %v627 = vunpack.c.l.s4 1983009808
  %v628 = vunpack.c.0.s8 %v627
  %v629 = vlaneseq
  %v630 = vshrl.u32 %v629, 7
  %v631 = vsub.s32 %v628, %v630
  %v632 = vrot.slane %v624, %v631
  %v634 = vunpack.c.l.s4 1983009808
  %v635 = vunpack.c.0.s8 %v634
  %v636 = vlaneseq
  %v637 = vshrl.u32 %v636, 7
  %v638 = vsub.s32 %v635, %v637
  %v639 = vrot.slane %v625, %v638
  %v640 = vcombine.low %v632, %v639
  %v642 = vadd.f32 %v477, %v640
  %v643 = vxor.u32 %v642, 2147483648
  %v644 = vmul.f32 %v643, 1.442695
  %v645 = vpow.pop %v644
  %v646 = vadd.f32 %v645, 1.0
  %v647 = vrcp.pop %v646
  %v648 = vmul.f32 1.0, %v647
  %v650 = vrot.slane %v642, 2
  %v652 = vxor.u32 %v650, 2147483648
  %v653 = vmul.f32 %v652, 1.442695
  %v654 = vpow.pop %v653
  %v655 = vadd.f32 %v654, 1.0
  %v656 = vrcp.pop %v655
  %v657 = vmul.f32 1.0, %v656
  %v658 = vrot.slane %v642, 4
  %v660 = vtanh.pop %v658
  %v661 = vrot.slane %v642, 6
  %v663 = vxor.u32 %v661, 2147483648
  %v664 = vmul.f32 %v663, 1.442695
  %v665 = vpow.pop %v664
  %v666 = vadd.f32 %v665, 1.0
  %v667 = vrcp.pop %v666
  %v668 = vmul.f32 1.0, %v667
  %v669 = vmul.f32 %v657, %v471
  %v670 = vmul.f32 %v648, %v660
  %v671 = vadd.f32 %v669, %v670
  %v672 = vtanh.pop %v671
  %v673 = vmul.f32 %v668, %v672
  %s674 = scalar_lea.vmem %s2, 4
  %675 = vst [vmem:[%s674] sm:$0x3] %v673
  %s676 = scalar_lea.vmem %s0, 24
  %v677 = vld [vmem:[%s676] sm:$0xff]
  %678 = vmatprep.subr.mxu0 %v15
  %679 = vmatpush1.msra.mxu0 %v14
  %680 = vmatprep.subr.mxu0 %v19
  %681 = vmatpush1.msra.mxu0 %v18
  %682 = vmatprep.subr.mxu0 %v23
  %683 = vmatpush1.msra.mxu0 %v22
  %684 = vmatprep.subr.mxu0 %v27
  %685 = vmatpush1.msra.mxu0 %v26
  %686 = vmatprep.subr.mxu0 %v31
  %687 = vmatpush1.msra.mxu0 %v30
  %688 = vmatprep.subr.mxu0 %v35
  %689 = vmatpush1.msra.mxu0 %v34
  %690 = vmatprep.subr.mxu0 %v39
  %691 = vmatpush1.msra.mxu0 %v38
  %692 = vmatprep.subr.mxu0 %v43
  %693 = vmatpush1.msra.mxu0 %v42
  %694 = vmatprep.subr.mxu0 %v47
  %695 = vmatpush1.msra.mxu0 %v46
  %696 = vmatprep.subr.mxu0 %v51
  %697 = vmatpush1.msra.mxu0 %v50
  %698 = vmatprep.subr.mxu0 %v55
  %699 = vmatpush1.msra.mxu0 %v54
  %700 = vmatprep.subr.mxu0 %v59
  %701 = vmatpush1.msra.mxu0 %v58
  %702 = vmatprep.subr.mxu0 %v63
  %703 = vmatpush1.msra.mxu0 %v62
  %704 = vmatprep.subr.mxu0 %v67
  %705 = vmatpush1.msra.mxu0 %v66
  %706 = vmatprep.subr.mxu0 %v71
  %707 = vmatpush1.msra.mxu0 %v70
  %708 = vmatprep.subr.mxu0 %v75
  %709 = vmatpush1.msra.mxu0 %v74
  %710 = vmatprep.subr.mxu0 0.0
  %711 = vmatpush1.msra.mxu0 0.0
  %712 = vmatprep.subr.mxu0 0.0
  %713 = vmatpush1.msra.mxu0 0.0
  %714 = vmatprep.subr.mxu0 0.0
  %715 = vmatpush1.msra.mxu0 0.0
  %716 = vmatprep.subr.mxu0 0.0
  %717 = vmatpush1.msra.mxu0 0.0
  %718 = vmatprep.subr.mxu0 0.0
  %719 = vmatpush1.msra.mxu0 0.0
  %720 = vmatprep.subr.mxu0 0.0
  %721 = vmatpush1.msra.mxu0 0.0
  %722 = vmatprep.subr.mxu0 0.0
  %723 = vmatpush1.msra.mxu0 0.0
  %724 = vmatprep.subr.mxu0 0.0
  %725 = vmatpush1.msra.mxu0 0.0
  %726 = vmatprep.subr.mxu0 0.0
  %727 = vmatpush1.msra.mxu0 0.0
  %728 = vmatprep.subr.mxu0 0.0
  %729 = vmatpush1.msra.mxu0 0.0
  %730 = vmatprep.subr.mxu0 0.0
  %731 = vmatpush1.msra.mxu0 0.0
  %732 = vmatprep.subr.mxu0 0.0
  %733 = vmatpush1.msra.mxu0 0.0
  %734 = vmatprep.subr.mxu0 0.0
  %735 = vmatpush1.msra.mxu0 0.0
  %736 = vmatprep.subr.mxu0 0.0
  %737 = vmatpush1.msra.mxu0 0.0
  %738 = vmatprep.subr.mxu0 0.0
  %739 = vmatpush1.msra.mxu0 0.0
  %740 = vmatprep.subr.mxu0 0.0
  %741 = vmatpush1.msra.mxu0 0.0
  %742 = vmatprep.mubr.f32.mxu0 0.0
  %743 = vmatmul.mubr.f32.gmra.mrb[0].mxu0 %v673
  %v744 = vpop.f32.mrb[0].mxu0
  %v745 = vadd.f32 0.0, %v744
  %v746 = vpop.f32.mrb[0].mxu0
  %v747 = vadd.f32 0.0, %v746
  %748 = vdwg.mxu0
  %749 = vmatprep.subr.mxu0 %v17
  %750 = vmatpush1.msra.mxu0 %v16
  %751 = vmatprep.subr.mxu0 %v21
  %752 = vmatpush1.msra.mxu0 %v20
  %753 = vmatprep.subr.mxu0 %v25
  %754 = vmatpush1.msra.mxu0 %v24
  %755 = vmatprep.subr.mxu0 %v29
  %756 = vmatpush1.msra.mxu0 %v28
  %757 = vmatprep.subr.mxu0 %v33
  %758 = vmatpush1.msra.mxu0 %v32
  %759 = vmatprep.subr.mxu0 %v37
  %760 = vmatpush1.msra.mxu0 %v36
  %761 = vmatprep.subr.mxu0 %v41
  %762 = vmatpush1.msra.mxu0 %v40
  %763 = vmatprep.subr.mxu0 %v45
  %764 = vmatpush1.msra.mxu0 %v44
  %765 = vmatprep.subr.mxu0 %v49
  %766 = vmatpush1.msra.mxu0 %v48
  %767 = vmatprep.subr.mxu0 %v53
  %768 = vmatpush1.msra.mxu0 %v52
  %769 = vmatprep.subr.mxu0 %v57
  %770 = vmatpush1.msra.mxu0 %v56
  %771 = vmatprep.subr.mxu0 %v61
  %772 = vmatpush1.msra.mxu0 %v60
  %773 = vmatprep.subr.mxu0 %v65
  %774 = vmatpush1.msra.mxu0 %v64
  %775 = vmatprep.subr.mxu0 %v69
  %776 = vmatpush1.msra.mxu0 %v68
  %777 = vmatprep.subr.mxu0 %v73
  %778 = vmatpush1.msra.mxu0 %v72
  %779 = vmatprep.subr.mxu0 %v77
  %780 = vmatpush1.msra.mxu0 %v76
  %781 = vmatprep.subr.mxu0 0.0
  %782 = vmatpush1.msra.mxu0 0.0
  %783 = vmatprep.subr.mxu0 0.0
  %784 = vmatpush1.msra.mxu0 0.0
  %785 = vmatprep.subr.mxu0 0.0
  %786 = vmatpush1.msra.mxu0 0.0
  %787 = vmatprep.subr.mxu0 0.0
  %788 = vmatpush1.msra.mxu0 0.0
  %789 = vmatprep.subr.mxu0 0.0
  %790 = vmatpush1.msra.mxu0 0.0
  %791 = vmatprep.subr.mxu0 0.0
  %792 = vmatpush1.msra.mxu0 0.0
  %793 = vmatprep.subr.mxu0 0.0
  %794 = vmatpush1.msra.mxu0 0.0
  %795 = vmatprep.subr.mxu0 0.0
  %796 = vmatpush1.msra.mxu0 0.0
  %797 = vmatprep.subr.mxu0 0.0
  %798 = vmatpush1.msra.mxu0 0.0
  %799 = vmatprep.subr.mxu0 0.0
  %800 = vmatpush1.msra.mxu0 0.0
  %801 = vmatprep.subr.mxu0 0.0
  %802 = vmatpush1.msra.mxu0 0.0
  %803 = vmatprep.subr.mxu0 0.0
  %804 = vmatpush1.msra.mxu0 0.0
  %805 = vmatprep.subr.mxu0 0.0
  %806 = vmatpush1.msra.mxu0 0.0
  %807 = vmatprep.subr.mxu0 0.0
  %808 = vmatpush1.msra.mxu0 0.0
  %809 = vmatprep.subr.mxu0 0.0
  %810 = vmatpush1.msra.mxu0 0.0
  %811 = vmatprep.subr.mxu0 0.0
  %812 = vmatpush1.msra.mxu0 0.0
  %813 = vmatprep.mubr.f32.mxu0 0.0
  %814 = vmatmul.mubr.f32.gmra.mrb[0].mxu0 %v673
  %v815 = vpop.f32.mrb[0].mxu0
  %v816 = vadd.f32 0.0, %v815
  %v817 = vpop.f32.mrb[0].mxu0
  %v818 = vadd.f32 0.0, %v817
  %819 = vdwg.mxu0
  %v824 = vcombine.low %v745, %v747
  %v825 = vcombine.low %v816, %v818
  %v827 = vunpack.c.l.s4 1983009808
  %v828 = vunpack.c.0.s8 %v827
  %v829 = vlaneseq
  %v830 = vshrl.u32 %v829, 7
  %v831 = vsub.s32 %v828, %v830
  %v832 = vrot.slane %v824, %v831
  %v834 = vunpack.c.l.s4 1983009808
  %v835 = vunpack.c.0.s8 %v834
  %v836 = vlaneseq
  %v837 = vshrl.u32 %v836, 7
  %v838 = vsub.s32 %v835, %v837
  %v839 = vrot.slane %v825, %v838
  %v840 = vcombine.low %v832, %v839
  %v842 = vadd.f32 %v677, %v840
  %v843 = vxor.u32 %v842, 2147483648
  %v844 = vmul.f32 %v843, 1.442695
  %v845 = vpow.pop %v844
  %v846 = vadd.f32 %v845, 1.0
  %v847 = vrcp.pop %v846
  %v848 = vmul.f32 1.0, %v847
  %v850 = vrot.slane %v842, 2
  %v852 = vxor.u32 %v850, 2147483648
  %v853 = vmul.f32 %v852, 1.442695
  %v854 = vpow.pop %v853
  %v855 = vadd.f32 %v854, 1.0
  %v856 = vrcp.pop %v855
  %v857 = vmul.f32 1.0, %v856
  %v858 = vrot.slane %v842, 4
  %v860 = vtanh.pop %v858
  %v861 = vrot.slane %v842, 6
  %v863 = vxor.u32 %v861, 2147483648
  %v864 = vmul.f32 %v863, 1.442695
  %v865 = vpow.pop %v864
  %v866 = vadd.f32 %v865, 1.0
  %v867 = vrcp.pop %v866
  %v868 = vmul.f32 1.0, %v867
  %v869 = vmul.f32 %v857, %v671
  %v870 = vmul.f32 %v848, %v860
  %v871 = vadd.f32 %v869, %v870
  %v872 = vtanh.pop %v871
  %v873 = vmul.f32 %v868, %v872
  %s874 = scalar_lea.vmem %s2, 6
  %875 = vst [vmem:[%s874] sm:$0x3] %v873
  %s876 = scalar_lea.vmem %s0, 32
  %v877 = vld [vmem:[%s876] sm:$0xff]
  %878 = vmatprep.subr.mxu0 %v15
  %879 = vmatpush1.msra.mxu0 %v14
  %880 = vmatprep.subr.mxu0 %v19
  %881 = vmatpush1.msra.mxu0 %v18
  %882 = vmatprep.subr.mxu0 %v23
  %883 = vmatpush1.msra.mxu0 %v22
  %884 = vmatprep.subr.mxu0 %v27
  %885 = vmatpush1.msra.mxu0 %v26
  %886 = vmatprep.subr.mxu0 %v31
  %887 = vmatpush1.msra.mxu0 %v30
  %888 = vmatprep.subr.mxu0 %v35
  %889 = vmatpush1.msra.mxu0 %v34
  %890 = vmatprep.subr.mxu0 %v39
  %891 = vmatpush1.msra.mxu0 %v38
  %892 = vmatprep.subr.mxu0 %v43
  %893 = vmatpush1.msra.mxu0 %v42
  %894 = vmatprep.subr.mxu0 %v47
  %895 = vmatpush1.msra.mxu0 %v46
  %896 = vmatprep.subr.mxu0 %v51
  %897 = vmatpush1.msra.mxu0 %v50
  %898 = vmatprep.subr.mxu0 %v55
  %899 = vmatpush1.msra.mxu0 %v54
  %900 = vmatprep.subr.mxu0 %v59
  %901 = vmatpush1.msra.mxu0 %v58
  %902 = vmatprep.subr.mxu0 %v63
  %903 = vmatpush1.msra.mxu0 %v62
  %904 = vmatprep.subr.mxu0 %v67
  %905 = vmatpush1.msra.mxu0 %v66
  %906 = vmatprep.subr.mxu0 %v71
  %907 = vmatpush1.msra.mxu0 %v70
  %908 = vmatprep.subr.mxu0 %v75
  %909 = vmatpush1.msra.mxu0 %v74
  %910 = vmatprep.subr.mxu0 0.0
  %911 = vmatpush1.msra.mxu0 0.0
  %912 = vmatprep.subr.mxu0 0.0
  %913 = vmatpush1.msra.mxu0 0.0
  %914 = vmatprep.subr.mxu0 0.0
  %915 = vmatpush1.msra.mxu0 0.0
  %916 = vmatprep.subr.mxu0 0.0
  %917 = vmatpush1.msra.mxu0 0.0
  %918 = vmatprep.subr.mxu0 0.0
  %919 = vmatpush1.msra.mxu0 0.0
  %920 = vmatprep.subr.mxu0 0.0
  %921 = vmatpush1.msra.mxu0 0.0
  %922 = vmatprep.subr.mxu0 0.0
  %923 = vmatpush1.msra.mxu0 0.0
  %924 = vmatprep.subr.mxu0 0.0
  %925 = vmatpush1.msra.mxu0 0.0
  %926 = vmatprep.subr.mxu0 0.0
  %927 = vmatpush1.msra.mxu0 0.0
  %928 = vmatprep.subr.mxu0 0.0
  %929 = vmatpush1.msra.mxu0 0.0
  %930 = vmatprep.subr.mxu0 0.0
  %931 = vmatpush1.msra.mxu0 0.0
  %932 = vmatprep.subr.mxu0 0.0
  %933 = vmatpush1.msra.mxu0 0.0
  %934 = vmatprep.subr.mxu0 0.0
  %935 = vmatpush1.msra.mxu0 0.0
  %936 = vmatprep.subr.mxu0 0.0
  %937 = vmatpush1.msra.mxu0 0.0
  %938 = vmatprep.subr.mxu0 0.0
  %939 = vmatpush1.msra.mxu0 0.0
  %940 = vmatprep.subr.mxu0 0.0
  %941 = vmatpush1.msra.mxu0 0.0
  %942 = vmatprep.mubr.f32.mxu0 0.0
  %943 = vmatmul.mubr.f32.gmra.mrb[0].mxu0 %v873
  %v944 = vpop.f32.mrb[0].mxu0
  %v945 = vadd.f32 0.0, %v944
  %v946 = vpop.f32.mrb[0].mxu0
  %v947 = vadd.f32 0.0, %v946
  %948 = vdwg.mxu0
  %949 = vmatprep.subr.mxu0 %v17
  %950 = vmatpush1.msra.mxu0 %v16
  %951 = vmatprep.subr.mxu0 %v21
  %952 = vmatpush1.msra.mxu0 %v20
  %953 = vmatprep.subr.mxu0 %v25
  %954 = vmatpush1.msra.mxu0 %v24
  %955 = vmatprep.subr.mxu0 %v29
  %956 = vmatpush1.msra.mxu0 %v28
  %957 = vmatprep.subr.mxu0 %v33
  %958 = vmatpush1.msra.mxu0 %v32
  %959 = vmatprep.subr.mxu0 %v37
  %960 = vmatpush1.msra.mxu0 %v36
  %961 = vmatprep.subr.mxu0 %v41
  %962 = vmatpush1.msra.mxu0 %v40
  %963 = vmatprep.subr.mxu0 %v45
  %964 = vmatpush1.msra.mxu0 %v44
  %965 = vmatprep.subr.mxu0 %v49
  %966 = vmatpush1.msra.mxu0 %v48
  %967 = vmatprep.subr.mxu0 %v53
  %968 = vmatpush1.msra.mxu0 %v52
  %969 = vmatprep.subr.mxu0 %v57
  %970 = vmatpush1.msra.mxu0 %v56
  %971 = vmatprep.subr.mxu0 %v61
  %972 = vmatpush1.msra.mxu0 %v60
  %973 = vmatprep.subr.mxu0 %v65
  %974 = vmatpush1.msra.mxu0 %v64
  %975 = vmatprep.subr.mxu0 %v69
  %976 = vmatpush1.msra.mxu0 %v68
  %977 = vmatprep.subr.mxu0 %v73
  %978 = vmatpush1.msra.mxu0 %v72
  %979 = vmatprep.subr.mxu0 %v77
  %980 = vmatpush1.msra.mxu0 %v76
  %981 = vmatprep.subr.mxu0 0.0
  %982 = vmatpush1.msra.mxu0 0.0
  %983 = vmatprep.subr.mxu0 0.0
  %984 = vmatpush1.msra.mxu0 0.0
  %985 = vmatprep.subr.mxu0 0.0
  %986 = vmatpush1.msra.mxu0 0.0
  %987 = vmatprep.subr.mxu0 0.0
  %988 = vmatpush1.msra.mxu0 0.0
  %989 = vmatprep.subr.mxu0 0.0
  %990 = vmatpush1.msra.mxu0 0.0
  %991 = vmatprep.subr.mxu0 0.0
  %992 = vmatpush1.msra.mxu0 0.0
  %993 = vmatprep.subr.mxu0 0.0
  %994 = vmatpush1.msra.mxu0 0.0
  %995 = vmatprep.subr.mxu0 0.0
  %996 = vmatpush1.msra.mxu0 0.0
  %997 = vmatprep.subr.mxu0 0.0
  %998 = vmatpush1.msra.mxu0 0.0
  %999 = vmatprep.subr.mxu0 0.0
  %1000 = vmatpush1.msra.mxu0 0.0
  %1001 = vmatprep.subr.mxu0 0.0
  %1002 = vmatpush1.msra.mxu0 0.0
  %1003 = vmatprep.subr.mxu0 0.0
  %1004 = vmatpush1.msra.mxu0 0.0
  %1005 = vmatprep.subr.mxu0 0.0
  %1006 = vmatpush1.msra.mxu0 0.0
  %1007 = vmatprep.subr.mxu0 0.0
  %1008 = vmatpush1.msra.mxu0 0.0
  %1009 = vmatprep.subr.mxu0 0.0
  %1010 = vmatpush1.msra.mxu0 0.0
  %1011 = vmatprep.subr.mxu0 0.0
  %1012 = vmatpush1.msra.mxu0 0.0
  %1013 = vmatprep.mubr.f32.mxu0 0.0
  %1014 = vmatmul.mubr.f32.gmra.mrb[0].mxu0 %v873
  %v1015 = vpop.f32.mrb[0].mxu0
  %v1016 = vadd.f32 0.0, %v1015
  %v1017 = vpop.f32.mrb[0].mxu0
  %v1018 = vadd.f32 0.0, %v1017
  %1019 = vdwg.mxu0
  %v1024 = vcombine.low %v945, %v947
  %v1025 = vcombine.low %v1016, %v1018
  %v1027 = vunpack.c.l.s4 1983009808
  %v1028 = vunpack.c.0.s8 %v1027
  %v1029 = vlaneseq
  %v1030 = vshrl.u32 %v1029, 7
  %v1031 = vsub.s32 %v1028, %v1030
  %v1032 = vrot.slane %v1024, %v1031
  %v1034 = vunpack.c.l.s4 1983009808
  %v1035 = vunpack.c.0.s8 %v1034
  %v1036 = vlaneseq
  %v1037 = vshrl.u32 %v1036, 7
  %v1038 = vsub.s32 %v1035, %v1037
  %v1039 = vrot.slane %v1025, %v1038
  %v1040 = vcombine.low %v1032, %v1039
  %v1042 = vadd.f32 %v877, %v1040
  %v1043 = vxor.u32 %v1042, 2147483648
  %v1044 = vmul.f32 %v1043, 1.442695
  %v1045 = vpow.pop %v1044
  %v1046 = vadd.f32 %v1045, 1.0
  %v1047 = vrcp.pop %v1046
  %v1048 = vmul.f32 1.0, %v1047
  %v1050 = vrot.slane %v1042, 2
  %v1052 = vxor.u32 %v1050, 2147483648
  %v1053 = vmul.f32 %v1052, 1.442695
  %v1054 = vpow.pop %v1053
  %v1055 = vadd.f32 %v1054, 1.0
  %v1056 = vrcp.pop %v1055
  %v1057 = vmul.f32 1.0, %v1056
  %v1058 = vrot.slane %v1042, 4
  %v1060 = vtanh.pop %v1058
  %v1061 = vrot.slane %v1042, 6
  %v1063 = vxor.u32 %v1061, 2147483648
  %v1064 = vmul.f32 %v1063, 1.442695
  %v1065 = vpow.pop %v1064
  %v1066 = vadd.f32 %v1065, 1.0
  %v1067 = vrcp.pop %v1066
  %v1068 = vmul.f32 1.0, %v1067
  %v1069 = vmul.f32 %v1057, %v871
  %v1070 = vmul.f32 %v1048, %v1060
  %v1071 = vadd.f32 %v1069, %v1070
  %v1072 = vtanh.pop %v1071
  %v1073 = vmul.f32 %v1068, %v1072
  %s1074 = scalar_lea.vmem %s2, 8
  %1075 = vst [vmem:[%s1074] sm:$0x3] %v1073
  %s1076 = scalar_lea.vmem %s0, 40
  %v1077 = vld [vmem:[%s1076] sm:$0xff]
  %1078 = vmatprep.subr.mxu0 %v15
  %1079 = vmatpush1.msra.mxu0 %v14
  %1080 = vmatprep.subr.mxu0 %v19
  %1081 = vmatpush1.msra.mxu0 %v18
  %1082 = vmatprep.subr.mxu0 %v23
  %1083 = vmatpush1.msra.mxu0 %v22
  %1084 = vmatprep.subr.mxu0 %v27
  %1085 = vmatpush1.msra.mxu0 %v26
  %1086 = vmatprep.subr.mxu0 %v31
  %1087 = vmatpush1.msra.mxu0 %v30
  %1088 = vmatprep.subr.mxu0 %v35
  %1089 = vmatpush1.msra.mxu0 %v34
  %1090 = vmatprep.subr.mxu0 %v39
  %1091 = vmatpush1.msra.mxu0 %v38
  %1092 = vmatprep.subr.mxu0 %v43
  %1093 = vmatpush1.msra.mxu0 %v42
  %1094 = vmatprep.subr.mxu0 %v47
  %1095 = vmatpush1.msra.mxu0 %v46
  %1096 = vmatprep.subr.mxu0 %v51
  %1097 = vmatpush1.msra.mxu0 %v50
  %1098 = vmatprep.subr.mxu0 %v55
  %1099 = vmatpush1.msra.mxu0 %v54
  %1100 = vmatprep.subr.mxu0 %v59
  %1101 = vmatpush1.msra.mxu0 %v58
  %1102 = vmatprep.subr.mxu0 %v63
  %1103 = vmatpush1.msra.mxu0 %v62
  %1104 = vmatprep.subr.mxu0 %v67
  %1105 = vmatpush1.msra.mxu0 %v66
  %1106 = vmatprep.subr.mxu0 %v71
  %1107 = vmatpush1.msra.mxu0 %v70
  %1108 = vmatprep.subr.mxu0 %v75
  %1109 = vmatpush1.msra.mxu0 %v74
  %1110 = vmatprep.subr.mxu0 0.0
  %1111 = vmatpush1.msra.mxu0 0.0
  %1112 = vmatprep.subr.mxu0 0.0
  %1113 = vmatpush1.msra.mxu0 0.0
  %1114 = vmatprep.subr.mxu0 0.0
  %1115 = vmatpush1.msra.mxu0 0.0
  %1116 = vmatprep.subr.mxu0 0.0
  %1117 = vmatpush1.msra.mxu0 0.0
  %1118 = vmatprep.subr.mxu0 0.0
  %1119 = vmatpush1.msra.mxu0 0.0
  %1120 = vmatprep.subr.mxu0 0.0
  %1121 = vmatpush1.msra.mxu0 0.0
  %1122 = vmatprep.subr.mxu0 0.0
  %1123 = vmatpush1.msra.mxu0 0.0
  %1124 = vmatprep.subr.mxu0 0.0
  %1125 = vmatpush1.msra.mxu0 0.0
  %1126 = vmatprep.subr.mxu0 0.0
  %1127 = vmatpush1.msra.mxu0 0.0
  %1128 = vmatprep.subr.mxu0 0.0
  %1129 = vmatpush1.msra.mxu0 0.0
  %1130 = vmatprep.subr.mxu0 0.0
  %1131 = vmatpush1.msra.mxu0 0.0
  %1132 = vmatprep.subr.mxu0 0.0
  %1133 = vmatpush1.msra.mxu0 0.0
  %1134 = vmatprep.subr.mxu0 0.0
  %1135 = vmatpush1.msra.mxu0 0.0
  %1136 = vmatprep.subr.mxu0 0.0
  %1137 = vmatpush1.msra.mxu0 0.0
  %1138 = vmatprep.subr.mxu0 0.0
  %1139 = vmatpush1.msra.mxu0 0.0
  %1140 = vmatprep.subr.mxu0 0.0
  %1141 = vmatpush1.msra.mxu0 0.0
  %1142 = vmatprep.mubr.f32.mxu0 0.0
  %1143 = vmatmul.mubr.f32.gmra.mrb[0].mxu0 %v1073
  %v1144 = vpop.f32.mrb[0].mxu0
  %v1145 = vadd.f32 0.0, %v1144
  %v1146 = vpop.f32.mrb[0].mxu0
  %v1147 = vadd.f32 0.0, %v1146
  %1148 = vdwg.mxu0
  %1149 = vmatprep.subr.mxu0 %v17
  %1150 = vmatpush1.msra.mxu0 %v16
  %1151 = vmatprep.subr.mxu0 %v21
  %1152 = vmatpush1.msra.mxu0 %v20
  %1153 = vmatprep.subr.mxu0 %v25
  %1154 = vmatpush1.msra.mxu0 %v24
  %1155 = vmatprep.subr.mxu0 %v29
  %1156 = vmatpush1.msra.mxu0 %v28
  %1157 = vmatprep.subr.mxu0 %v33
  %1158 = vmatpush1.msra.mxu0 %v32
  %1159 = vmatprep.subr.mxu0 %v37
  %1160 = vmatpush1.msra.mxu0 %v36
  %1161 = vmatprep.subr.mxu0 %v41
  %1162 = vmatpush1.msra.mxu0 %v40
  %1163 = vmatprep.subr.mxu0 %v45
  %1164 = vmatpush1.msra.mxu0 %v44
  %1165 = vmatprep.subr.mxu0 %v49
  %1166 = vmatpush1.msra.mxu0 %v48
  %1167 = vmatprep.subr.mxu0 %v53
  %1168 = vmatpush1.msra.mxu0 %v52
  %1169 = vmatprep.subr.mxu0 %v57
  %1170 = vmatpush1.msra.mxu0 %v56
  %1171 = vmatprep.subr.mxu0 %v61
  %1172 = vmatpush1.msra.mxu0 %v60
  %1173 = vmatprep.subr.mxu0 %v65
  %1174 = vmatpush1.msra.mxu0 %v64
  %1175 = vmatprep.subr.mxu0 %v69
  %1176 = vmatpush1.msra.mxu0 %v68
  %1177 = vmatprep.subr.mxu0 %v73
  %1178 = vmatpush1.msra.mxu0 %v72
  %1179 = vmatprep.subr.mxu0 %v77
  %1180 = vmatpush1.msra.mxu0 %v76
  %1181 = vmatprep.subr.mxu0 0.0
  %1182 = vmatpush1.msra.mxu0 0.0
  %1183 = vmatprep.subr.mxu0 0.0
  %1184 = vmatpush1.msra.mxu0 0.0
  %1185 = vmatprep.subr.mxu0 0.0
  %1186 = vmatpush1.msra.mxu0 0.0
  %1187 = vmatprep.subr.mxu0 0.0
  %1188 = vmatpush1.msra.mxu0 0.0
  %1189 = vmatprep.subr.mxu0 0.0
  %1190 = vmatpush1.msra.mxu0 0.0
  %1191 = vmatprep.subr.mxu0 0.0
  %1192 = vmatpush1.msra.mxu0 0.0
  %1193 = vmatprep.subr.mxu0 0.0
  %1194 = vmatpush1.msra.mxu0 0.0
  %1195 = vmatprep.subr.mxu0 0.0
  %1196 = vmatpush1.msra.mxu0 0.0
  %1197 = vmatprep.subr.mxu0 0.0
  %1198 = vmatpush1.msra.mxu0 0.0
  %1199 = vmatprep.subr.mxu0 0.0
  %1200 = vmatpush1.msra.mxu0 0.0
  %1201 = vmatprep.subr.mxu0 0.0
  %1202 = vmatpush1.msra.mxu0 0.0
  %1203 = vmatprep.subr.mxu0 0.0
  %1204 = vmatpush1.msra.mxu0 0.0
  %1205 = vmatprep.subr.mxu0 0.0
  %1206 = vmatpush1.msra.mxu0 0.0
  %1207 = vmatprep.subr.mxu0 0.0
  %1208 = vmatpush1.msra.mxu0 0.0
  %1209 = vmatprep.subr.mxu0 0.0
  %1210 = vmatpush1.msra.mxu0 0.0
  %1211 = vmatprep.subr.mxu0 0.0
  %1212 = vmatpush1.msra.mxu0 0.0
  %1213 = vmatprep.mubr.f32.mxu0 0.0
  %1214 = vmatmul.mubr.f32.gmra.mrb[0].mxu0 %v1073
  %v1215 = vpop.f32.mrb[0].mxu0
  %v1216 = vadd.f32 0.0, %v1215
  %v1217 = vpop.f32.mrb[0].mxu0
  %v1218 = vadd.f32 0.0, %v1217
  %1219 = vdwg.mxu0
  %v1224 = vcombine.low %v1145, %v1147
  %v1225 = vcombine.low %v1216, %v1218
  %v1227 = vunpack.c.l.s4 1983009808
  %v1228 = vunpack.c.0.s8 %v1227
  %v1229 = vlaneseq
  %v1230 = vshrl.u32 %v1229, 7
  %v1231 = vsub.s32 %v1228, %v1230
  %v1232 = vrot.slane %v1224, %v1231
  %v1234 = vunpack.c.l.s4 1983009808
  %v1235 = vunpack.c.0.s8 %v1234
  %v1236 = vlaneseq
  %v1237 = vshrl.u32 %v1236, 7
  %v1238 = vsub.s32 %v1235, %v1237
  %v1239 = vrot.slane %v1225, %v1238
  %v1240 = vcombine.low %v1232, %v1239
  %v1242 = vadd.f32 %v1077, %v1240
  %v1243 = vxor.u32 %v1242, 2147483648
  %v1244 = vmul.f32 %v1243, 1.442695
  %v1245 = vpow.pop %v1244
  %v1246 = vadd.f32 %v1245, 1.0
  %v1247 = vrcp.pop %v1246
  %v1248 = vmul.f32 1.0, %v1247
  %v1250 = vrot.slane %v1242, 2
  %v1252 = vxor.u32 %v1250, 2147483648
  %v1253 = vmul.f32 %v1252, 1.442695
  %v1254 = vpow.pop %v1253
  %v1255 = vadd.f32 %v1254, 1.0
  %v1256 = vrcp.pop %v1255
  %v1257 = vmul.f32 1.0, %v1256
  %v1258 = vrot.slane %v1242, 4
  %v1260 = vtanh.pop %v1258
  %v1261 = vrot.slane %v1242, 6
  %v1263 = vxor.u32 %v1261, 2147483648
  %v1264 = vmul.f32 %v1263, 1.442695
  %v1265 = vpow.pop %v1264
  %v1266 = vadd.f32 %v1265, 1.0
  %v1267 = vrcp.pop %v1266
  %v1268 = vmul.f32 1.0, %v1267
  %v1269 = vmul.f32 %v1257, %v1071
  %v1270 = vmul.f32 %v1248, %v1260
  %v1271 = vadd.f32 %v1269, %v1270
  %v1272 = vtanh.pop %v1271
  %v1273 = vmul.f32 %v1268, %v1272
  %s1274 = scalar_lea.vmem %s2, 10
  %1275 = vst [vmem:[%s1274] sm:$0x3] %v1273
  %s1276 = scalar_lea.vmem %s0, 48
  %v1277 = vld [vmem:[%s1276] sm:$0xff]
  %1278 = vmatprep.subr.mxu0 %v15
  %1279 = vmatpush1.msra.mxu0 %v14
  %1280 = vmatprep.subr.mxu0 %v19
  %1281 = vmatpush1.msra.mxu0 %v18
  %1282 = vmatprep.subr.mxu0 %v23
  %1283 = vmatpush1.msra.mxu0 %v22
  %1284 = vmatprep.subr.mxu0 %v27
  %1285 = vmatpush1.msra.mxu0 %v26
  %1286 = vmatprep.subr.mxu0 %v31
  %1287 = vmatpush1.msra.mxu0 %v30
  %1288 = vmatprep.subr.mxu0 %v35
  %1289 = vmatpush1.msra.mxu0 %v34
  %1290 = vmatprep.subr.mxu0 %v39
  %1291 = vmatpush1.msra.mxu0 %v38
  %1292 = vmatprep.subr.mxu0 %v43
  %1293 = vmatpush1.msra.mxu0 %v42
  %1294 = vmatprep.subr.mxu0 %v47
  %1295 = vmatpush1.msra.mxu0 %v46
  %1296 = vmatprep.subr.mxu0 %v51
  %1297 = vmatpush1.msra.mxu0 %v50
  %1298 = vmatprep.subr.mxu0 %v55
  %1299 = vmatpush1.msra.mxu0 %v54
  %1300 = vmatprep.subr.mxu0 %v59
  %1301 = vmatpush1.msra.mxu0 %v58
  %1302 = vmatprep.subr.mxu0 %v63
  %1303 = vmatpush1.msra.mxu0 %v62
  %1304 = vmatprep.subr.mxu0 %v67
  %1305 = vmatpush1.msra.mxu0 %v66
  %1306 = vmatprep.subr.mxu0 %v71
  %1307 = vmatpush1.msra.mxu0 %v70
  %1308 = vmatprep.subr.mxu0 %v75
  %1309 = vmatpush1.msra.mxu0 %v74
  %1310 = vmatprep.subr.mxu0 0.0
  %1311 = vmatpush1.msra.mxu0 0.0
  %1312 = vmatprep.subr.mxu0 0.0
  %1313 = vmatpush1.msra.mxu0 0.0
  %1314 = vmatprep.subr.mxu0 0.0
  %1315 = vmatpush1.msra.mxu0 0.0
  %1316 = vmatprep.subr.mxu0 0.0
  %1317 = vmatpush1.msra.mxu0 0.0
  %1318 = vmatprep.subr.mxu0 0.0
  %1319 = vmatpush1.msra.mxu0 0.0
  %1320 = vmatprep.subr.mxu0 0.0
  %1321 = vmatpush1.msra.mxu0 0.0
  %1322 = vmatprep.subr.mxu0 0.0
  %1323 = vmatpush1.msra.mxu0 0.0
  %1324 = vmatprep.subr.mxu0 0.0
  %1325 = vmatpush1.msra.mxu0 0.0
  %1326 = vmatprep.subr.mxu0 0.0
  %1327 = vmatpush1.msra.mxu0 0.0
  %1328 = vmatprep.subr.mxu0 0.0
  %1329 = vmatpush1.msra.mxu0 0.0
  %1330 = vmatprep.subr.mxu0 0.0
  %1331 = vmatpush1.msra.mxu0 0.0
  %1332 = vmatprep.subr.mxu0 0.0
  %1333 = vmatpush1.msra.mxu0 0.0
  %1334 = vmatprep.subr.mxu0 0.0
  %1335 = vmatpush1.msra.mxu0 0.0
  %1336 = vmatprep.subr.mxu0 0.0
  %1337 = vmatpush1.msra.mxu0 0.0
  %1338 = vmatprep.subr.mxu0 0.0
  %1339 = vmatpush1.msra.mxu0 0.0
  %1340 = vmatprep.subr.mxu0 0.0
  %1341 = vmatpush1.msra.mxu0 0.0
  %1342 = vmatprep.mubr.f32.mxu0 0.0
  %1343 = vmatmul.mubr.f32.gmra.mrb[0].mxu0 %v1273
  %v1344 = vpop.f32.mrb[0].mxu0
  %v1345 = vadd.f32 0.0, %v1344
  %v1346 = vpop.f32.mrb[0].mxu0
  %v1347 = vadd.f32 0.0, %v1346
  %1348 = vdwg.mxu0
  %1349 = vmatprep.subr.mxu0 %v17
  %1350 = vmatpush1.msra.mxu0 %v16
  %1351 = vmatprep.subr.mxu0 %v21
  %1352 = vmatpush1.msra.mxu0 %v20
  %1353 = vmatprep.subr.mxu0 %v25
  %1354 = vmatpush1.msra.mxu0 %v24
  %1355 = vmatprep.subr.mxu0 %v29
  %1356 = vmatpush1.msra.mxu0 %v28
  %1357 = vmatprep.subr.mxu0 %v33
  %1358 = vmatpush1.msra.mxu0 %v32
  %1359 = vmatprep.subr.mxu0 %v37
  %1360 = vmatpush1.msra.mxu0 %v36
  %1361 = vmatprep.subr.mxu0 %v41
  %1362 = vmatpush1.msra.mxu0 %v40
  %1363 = vmatprep.subr.mxu0 %v45
  %1364 = vmatpush1.msra.mxu0 %v44
  %1365 = vmatprep.subr.mxu0 %v49
  %1366 = vmatpush1.msra.mxu0 %v48
  %1367 = vmatprep.subr.mxu0 %v53
  %1368 = vmatpush1.msra.mxu0 %v52
  %1369 = vmatprep.subr.mxu0 %v57
  %1370 = vmatpush1.msra.mxu0 %v56
  %1371 = vmatprep.subr.mxu0 %v61
  %1372 = vmatpush1.msra.mxu0 %v60
  %1373 = vmatprep.subr.mxu0 %v65
  %1374 = vmatpush1.msra.mxu0 %v64
  %1375 = vmatprep.subr.mxu0 %v69
  %1376 = vmatpush1.msra.mxu0 %v68
  %1377 = vmatprep.subr.mxu0 %v73
  %1378 = vmatpush1.msra.mxu0 %v72
  %1379 = vmatprep.subr.mxu0 %v77
  %1380 = vmatpush1.msra.mxu0 %v76
  %1381 = vmatprep.subr.mxu0 0.0
  %1382 = vmatpush1.msra.mxu0 0.0
  %1383 = vmatprep.subr.mxu0 0.0
  %1384 = vmatpush1.msra.mxu0 0.0
  %1385 = vmatprep.subr.mxu0 0.0
  %1386 = vmatpush1.msra.mxu0 0.0
  %1387 = vmatprep.subr.mxu0 0.0
  %1388 = vmatpush1.msra.mxu0 0.0
  %1389 = vmatprep.subr.mxu0 0.0
  %1390 = vmatpush1.msra.mxu0 0.0
  %1391 = vmatprep.subr.mxu0 0.0
  %1392 = vmatpush1.msra.mxu0 0.0
  %1393 = vmatprep.subr.mxu0 0.0
  %1394 = vmatpush1.msra.mxu0 0.0
  %1395 = vmatprep.subr.mxu0 0.0
  %1396 = vmatpush1.msra.mxu0 0.0
  %1397 = vmatprep.subr.mxu0 0.0
  %1398 = vmatpush1.msra.mxu0 0.0
  %1399 = vmatprep.subr.mxu0 0.0
  %1400 = vmatpush1.msra.mxu0 0.0
  %1401 = vmatprep.subr.mxu0 0.0
  %1402 = vmatpush1.msra.mxu0 0.0
  %1403 = vmatprep.subr.mxu0 0.0
  %1404 = vmatpush1.msra.mxu0 0.0
  %1405 = vmatprep.subr.mxu0 0.0
  %1406 = vmatpush1.msra.mxu0 0.0
  %1407 = vmatprep.subr.mxu0 0.0
  %1408 = vmatpush1.msra.mxu0 0.0
  %1409 = vmatprep.subr.mxu0 0.0
  %1410 = vmatpush1.msra.mxu0 0.0
  %1411 = vmatprep.subr.mxu0 0.0
  %1412 = vmatpush1.msra.mxu0 0.0
  %1413 = vmatprep.mubr.f32.mxu0 0.0
  %1414 = vmatmul.mubr.f32.gmra.mrb[0].mxu0 %v1273
  %v1415 = vpop.f32.mrb[0].mxu0
  %v1416 = vadd.f32 0.0, %v1415
  %v1417 = vpop.f32.mrb[0].mxu0
  %v1418 = vadd.f32 0.0, %v1417
  %1419 = vdwg.mxu0
  %v1424 = vcombine.low %v1345, %v1347
  %v1425 = vcombine.low %v1416, %v1418
  %v1427 = vunpack.c.l.s4 1983009808
  %v1428 = vunpack.c.0.s8 %v1427
  %v1429 = vlaneseq
  %v1430 = vshrl.u32 %v1429, 7
  %v1431 = vsub.s32 %v1428, %v1430
  %v1432 = vrot.slane %v1424, %v1431
  %v1434 = vunpack.c.l.s4 1983009808
  %v1435 = vunpack.c.0.s8 %v1434
  %v1436 = vlaneseq
  %v1437 = vshrl.u32 %v1436, 7
  %v1438 = vsub.s32 %v1435, %v1437
  %v1439 = vrot.slane %v1425, %v1438
  %v1440 = vcombine.low %v1432, %v1439
  %v1442 = vadd.f32 %v1277, %v1440
  %v1443 = vxor.u32 %v1442, 2147483648
  %v1444 = vmul.f32 %v1443, 1.442695
  %v1445 = vpow.pop %v1444
  %v1446 = vadd.f32 %v1445, 1.0
  %v1447 = vrcp.pop %v1446
  %v1448 = vmul.f32 1.0, %v1447
  %v1450 = vrot.slane %v1442, 2
  %v1452 = vxor.u32 %v1450, 2147483648
  %v1453 = vmul.f32 %v1452, 1.442695
  %v1454 = vpow.pop %v1453
  %v1455 = vadd.f32 %v1454, 1.0
  %v1456 = vrcp.pop %v1455
  %v1457 = vmul.f32 1.0, %v1456
  %v1458 = vrot.slane %v1442, 4
  %v1460 = vtanh.pop %v1458
  %v1461 = vrot.slane %v1442, 6
  %v1463 = vxor.u32 %v1461, 2147483648
  %v1464 = vmul.f32 %v1463, 1.442695
  %v1465 = vpow.pop %v1464
  %v1466 = vadd.f32 %v1465, 1.0
  %v1467 = vrcp.pop %v1466
  %v1468 = vmul.f32 1.0, %v1467
  %v1469 = vmul.f32 %v1457, %v1271
  %v1470 = vmul.f32 %v1448, %v1460
  %v1471 = vadd.f32 %v1469, %v1470
  %v1472 = vtanh.pop %v1471
  %v1473 = vmul.f32 %v1468, %v1472
  %s1474 = scalar_lea.vmem %s2, 12
  %1475 = vst [vmem:[%s1474] sm:$0x3] %v1473
  %s1476 = scalar_lea.vmem %s0, 56
  %v1477 = vld [vmem:[%s1476] sm:$0xff]
  %1478 = vmatprep.subr.mxu0 %v15
  %1479 = vmatpush1.msra.mxu0 %v14
  %1480 = vmatprep.subr.mxu0 %v19
  %1481 = vmatpush1.msra.mxu0 %v18
  %1482 = vmatprep.subr.mxu0 %v23
  %1483 = vmatpush1.msra.mxu0 %v22
  %1484 = vmatprep.subr.mxu0 %v27
  %1485 = vmatpush1.msra.mxu0 %v26
  %1486 = vmatprep.subr.mxu0 %v31
  %1487 = vmatpush1.msra.mxu0 %v30
  %1488 = vmatprep.subr.mxu0 %v35
  %1489 = vmatpush1.msra.mxu0 %v34
  %1490 = vmatprep.subr.mxu0 %v39
  %1491 = vmatpush1.msra.mxu0 %v38
  %1492 = vmatprep.subr.mxu0 %v43
  %1493 = vmatpush1.msra.mxu0 %v42
  %1494 = vmatprep.subr.mxu0 %v47
  %1495 = vmatpush1.msra.mxu0 %v46
  %1496 = vmatprep.subr.mxu0 %v51
  %1497 = vmatpush1.msra.mxu0 %v50
  %1498 = vmatprep.subr.mxu0 %v55
  %1499 = vmatpush1.msra.mxu0 %v54
  %1500 = vmatprep.subr.mxu0 %v59
  %1501 = vmatpush1.msra.mxu0 %v58
  %1502 = vmatprep.subr.mxu0 %v63
  %1503 = vmatpush1.msra.mxu0 %v62
  %1504 = vmatprep.subr.mxu0 %v67
  %1505 = vmatpush1.msra.mxu0 %v66
  %1506 = vmatprep.subr.mxu0 %v71
  %1507 = vmatpush1.msra.mxu0 %v70
  %1508 = vmatprep.subr.mxu0 %v75
  %1509 = vmatpush1.msra.mxu0 %v74
  %1510 = vmatprep.subr.mxu0 0.0
  %1511 = vmatpush1.msra.mxu0 0.0
  %1512 = vmatprep.subr.mxu0 0.0
  %1513 = vmatpush1.msra.mxu0 0.0
  %1514 = vmatprep.subr.mxu0 0.0
  %1515 = vmatpush1.msra.mxu0 0.0
  %1516 = vmatprep.subr.mxu0 0.0
  %1517 = vmatpush1.msra.mxu0 0.0
  %1518 = vmatprep.subr.mxu0 0.0
  %1519 = vmatpush1.msra.mxu0 0.0
  %1520 = vmatprep.subr.mxu0 0.0
  %1521 = vmatpush1.msra.mxu0 0.0
  %1522 = vmatprep.subr.mxu0 0.0
  %1523 = vmatpush1.msra.mxu0 0.0
  %1524 = vmatprep.subr.mxu0 0.0
  %1525 = vmatpush1.msra.mxu0 0.0
  %1526 = vmatprep.subr.mxu0 0.0
  %1527 = vmatpush1.msra.mxu0 0.0
  %1528 = vmatprep.subr.mxu0 0.0
  %1529 = vmatpush1.msra.mxu0 0.0
  %1530 = vmatprep.subr.mxu0 0.0
  %1531 = vmatpush1.msra.mxu0 0.0
  %1532 = vmatprep.subr.mxu0 0.0
  %1533 = vmatpush1.msra.mxu0 0.0
  %1534 = vmatprep.subr.mxu0 0.0
  %1535 = vmatpush1.msra.mxu0 0.0
  %1536 = vmatprep.subr.mxu0 0.0
  %1537 = vmatpush1.msra.mxu0 0.0
  %1538 = vmatprep.subr.mxu0 0.0
  %1539 = vmatpush1.msra.mxu0 0.0
  %1540 = vmatprep.subr.mxu0 0.0
  %1541 = vmatpush1.msra.mxu0 0.0
  %1542 = vmatprep.mubr.f32.mxu0 0.0
  %1543 = vmatmul.mubr.f32.gmra.mrb[0].mxu0 %v1473
  %v1544 = vpop.f32.mrb[0].mxu0
  %v1545 = vadd.f32 0.0, %v1544
  %v1546 = vpop.f32.mrb[0].mxu0
  %v1547 = vadd.f32 0.0, %v1546
  %1548 = vdwg.mxu0
  %1549 = vmatprep.subr.mxu0 %v17
  %1550 = vmatpush1.msra.mxu0 %v16
  %1551 = vmatprep.subr.mxu0 %v21
  %1552 = vmatpush1.msra.mxu0 %v20
  %1553 = vmatprep.subr.mxu0 %v25
  %1554 = vmatpush1.msra.mxu0 %v24
  %1555 = vmatprep.subr.mxu0 %v29
  %1556 = vmatpush1.msra.mxu0 %v28
  %1557 = vmatprep.subr.mxu0 %v33
  %1558 = vmatpush1.msra.mxu0 %v32
  %1559 = vmatprep.subr.mxu0 %v37
  %1560 = vmatpush1.msra.mxu0 %v36
  %1561 = vmatprep.subr.mxu0 %v41
  %1562 = vmatpush1.msra.mxu0 %v40
  %1563 = vmatprep.subr.mxu0 %v45
  %1564 = vmatpush1.msra.mxu0 %v44
  %1565 = vmatprep.subr.mxu0 %v49
  %1566 = vmatpush1.msra.mxu0 %v48
  %1567 = vmatprep.subr.mxu0 %v53
  %1568 = vmatpush1.msra.mxu0 %v52
  %1569 = vmatprep.subr.mxu0 %v57
  %1570 = vmatpush1.msra.mxu0 %v56
  %1571 = vmatprep.subr.mxu0 %v61
  %1572 = vmatpush1.msra.mxu0 %v60
  %1573 = vmatprep.subr.mxu0 %v65
  %1574 = vmatpush1.msra.mxu0 %v64
  %1575 = vmatprep.subr.mxu0 %v69
  %1576 = vmatpush1.msra.mxu0 %v68
  %1577 = vmatprep.subr.mxu0 %v73
  %1578 = vmatpush1.msra.mxu0 %v72
  %1579 = vmatprep.subr.mxu0 %v77
  %1580 = vmatpush1.msra.mxu0 %v76
  %1581 = vmatprep.subr.mxu0 0.0
  %1582 = vmatpush1.msra.mxu0 0.0
  %1583 = vmatprep.subr.mxu0 0.0
  %1584 = vmatpush1.msra.mxu0 0.0
  %1585 = vmatprep.subr.mxu0 0.0
  %1586 = vmatpush1.msra.mxu0 0.0
  %1587 = vmatprep.subr.mxu0 0.0
  %1588 = vmatpush1.msra.mxu0 0.0
  %1589 = vmatprep.subr.mxu0 0.0
  %1590 = vmatpush1.msra.mxu0 0.0
  %1591 = vmatprep.subr.mxu0 0.0
  %1592 = vmatpush1.msra.mxu0 0.0
  %1593 = vmatprep.subr.mxu0 0.0
  %1594 = vmatpush1.msra.mxu0 0.0
  %1595 = vmatprep.subr.mxu0 0.0
  %1596 = vmatpush1.msra.mxu0 0.0
  %1597 = vmatprep.subr.mxu0 0.0
  %1598 = vmatpush1.msra.mxu0 0.0
  %1599 = vmatprep.subr.mxu0 0.0
  %1600 = vmatpush1.msra.mxu0 0.0
  %1601 = vmatprep.subr.mxu0 0.0
  %1602 = vmatpush1.msra.mxu0 0.0
  %1603 = vmatprep.subr.mxu0 0.0
  %1604 = vmatpush1.msra.mxu0 0.0
  %1605 = vmatprep.subr.mxu0 0.0
  %1606 = vmatpush1.msra.mxu0 0.0
  %1607 = vmatprep.subr.mxu0 0.0
  %1608 = vmatpush1.msra.mxu0 0.0
  %1609 = vmatprep.subr.mxu0 0.0
  %1610 = vmatpush1.msra.mxu0 0.0
  %1611 = vmatprep.subr.mxu0 0.0
  %1612 = vmatpush1.msra.mxu0 0.0
  %1613 = vmatprep.mubr.f32.mxu0 0.0
  %1614 = vmatmul.mubr.f32.gmra.mrb[0].mxu0 %v1473
  %v1615 = vpop.f32.mrb[0].mxu0
  %v1616 = vadd.f32 0.0, %v1615
  %v1617 = vpop.f32.mrb[0].mxu0
  %v1618 = vadd.f32 0.0, %v1617
  %1619 = vdwg.mxu0
  %v1624 = vcombine.low %v1545, %v1547
  %v1625 = vcombine.low %v1616, %v1618
  %v1627 = vunpack.c.l.s4 1983009808
  %v1628 = vunpack.c.0.s8 %v1627
  %v1629 = vlaneseq
  %v1630 = vshrl.u32 %v1629, 7
  %v1631 = vsub.s32 %v1628, %v1630
  %v1632 = vrot.slane %v1624, %v1631
  %v1634 = vunpack.c.l.s4 1983009808
  %v1635 = vunpack.c.0.s8 %v1634
  %v1636 = vlaneseq
  %v1637 = vshrl.u32 %v1636, 7
  %v1638 = vsub.s32 %v1635, %v1637
  %v1639 = vrot.slane %v1625, %v1638
  %v1640 = vcombine.low %v1632, %v1639
  %v1642 = vadd.f32 %v1477, %v1640
  %v1643 = vxor.u32 %v1642, 2147483648
  %v1644 = vmul.f32 %v1643, 1.442695
  %v1645 = vpow.pop %v1644
  %v1646 = vadd.f32 %v1645, 1.0
  %v1647 = vrcp.pop %v1646
  %v1648 = vmul.f32 1.0, %v1647
  %v1650 = vrot.slane %v1642, 2
  %v1652 = vxor.u32 %v1650, 2147483648
  %v1653 = vmul.f32 %v1652, 1.442695
  %v1654 = vpow.pop %v1653
  %v1655 = vadd.f32 %v1654, 1.0
  %v1656 = vrcp.pop %v1655
  %v1657 = vmul.f32 1.0, %v1656
  %v1658 = vrot.slane %v1642, 4
  %v1660 = vtanh.pop %v1658
  %v1661 = vrot.slane %v1642, 6
  %v1663 = vxor.u32 %v1661, 2147483648
  %v1664 = vmul.f32 %v1663, 1.442695
  %v1665 = vpow.pop %v1664
  %v1666 = vadd.f32 %v1665, 1.0
  %v1667 = vrcp.pop %v1666
  %v1668 = vmul.f32 1.0, %v1667
  %v1669 = vmul.f32 %v1657, %v1471
  %v1670 = vmul.f32 %v1648, %v1660
  %v1671 = vadd.f32 %v1669, %v1670
  %v1672 = vtanh.pop %v1671
  %v1673 = vmul.f32 %v1668, %v1672
  %s1674 = scalar_lea.vmem %s2, 14
  %1675 = vst [vmem:[%s1674] sm:$0x3] %v1673
  %1676 = vst [vmem:[%s3] sm:$0x3] %v1673
  %1677 = vst [vmem:[%s4] sm:$0x3] %v1671
  // Predicated region
  $region10: #{encoder_forward.4} parent=0 // pred_check
    _
  $region11: #{encoder_forward.4} parent=0 // pred_check_branch
    %1679 = sbr.rel (0) target = $region13
  $region12: #{encoder_forward.4} parent=0 // pred_region
    _
  $region13: #{encoder_forward.4} parent=0 // pred_fallthru
    _
  // Predicated region
  $region14: #{encoder_forward.4} parent=0 // pred_check
    _
  $region15: #{encoder_forward.4} parent=0 // pred_check_branch
    %1681 = sbr.rel (0) target = $region17
  $region16: #{encoder_forward.4} parent=0 // pred_region
    _
  $region17: #{encoder_forward.4} parent=0 // pred_fallthru
    _
  // Predicated region
  $region18: #{encoder_forward.4} parent=0 // pred_check
    _
  $region19: #{encoder_forward.4} parent=0 // pred_check_branch
    %1683 = sbr.rel (0) target = $region21
  $region20: #{encoder_forward.4} parent=0 // pred_region
    _
  $region21: #{encoder_forward.4} parent=0 // pred_fallthru
    _
  // Predicated region
  $region22: #{encoder_forward.4} parent=0 // pred_check
    _
  $region23: #{encoder_forward.4} parent=0 // pred_check_branch
    %1685 = sbr.rel (0) target = $region25
  $region24: #{encoder_forward.4} parent=0 // pred_region
    _
  $region25: #{encoder_forward.4} parent=0 // pred_fallthru
    _
  // Predicated region
  $region26: #{encoder_forward.4} parent=0 // pred_check
    _
  $region27: #{encoder_forward.4} parent=0 // pred_check_branch
    %1687 = sbr.rel (0) target = $region29
  $region28: #{encoder_forward.4} parent=0 // pred_region
    _
  $region29: #{encoder_forward.4} parent=0 // pred_fallthru
    _
  // Predicated region
  $region30: #{encoder_forward.4} parent=0 // pred_check
    _
  $region31: #{encoder_forward.4} parent=0 // pred_check_branch
    %1689 = sbr.rel (0) target = $region33
  $region32: #{encoder_forward.4} parent=0 // pred_region
    _
  $region33: #{encoder_forward.4} parent=0 // pred_fallthru
    _

</llo_original>
